<compile_context>
chip_gen: v7x
topology: tpu7x:2x2x1
jax: 0.10.0
libtpu: 0.0.40
codegen_flags: <defaults>
</compile_context>

<pallas_src>
import jax
import jax.numpy as jnp
from jax.experimental import pallas as pl
from jax.experimental.pallas import tpu as pltpu

# ---- small config consistent with the module ----
BATCH = 2
MAX_WORDS = 8        # max_words_per_sent
MAX_TOKS = 4         # max_tokens_per_word (T)
HIDDEN = 32          # hidden_size (H)
NUM_LABELS = 5
VOCAB = 64
LABEL_PAD = 128      # lane-dense output width; sliced back to NUM_LABELS outside

# bf16 matmul operands (f32 accumulation via preferred_element_type) -> native
# MXU path on v6e/v7x and half the weight DMA bytes.
MATMUL_DTYPE = jnp.bfloat16

PACKED_ORDER = ("wx0", "b0", "wh0", "wx1", "b1", "wh1", "cls_w", "cls_b")


# ---------------------------------------------------------------------------
# Fused forward math (used both inside the kernel and as the packed reference)
# ---------------------------------------------------------------------------
def _bilstm_fused_layer(xg_all, wh, g_scale, g_shift, T, H):
    """One bidirectional LSTM layer with both directions stepped in lockstep.

    xg_all : (n, T*8H) f32 — precomputed input-to-gate projections (+bias) for
             every step; per-step lane layout is gate-major over both
             directions: [ i_f i_r | f_f f_r | g_f g_r | o_f o_r ].
             The g-gate lanes carry a 2x folded into the packed weights so that
             tanh(z) = 2*sigmoid(2z) - 1 can be recovered from one sigmoid.
    wh     : (2H, 8H) fused (block-diagonal per gate) recurrent weight, with
             the same 2x fold on its g-gate output columns.
    g_scale/g_shift : (n, 8H) per-lane FMA constants (2/-1 on g lanes, 1/0
             elsewhere), built ONCE by the caller (kept off the serial chain).
    Returns per-step fused hidden states h_s = [h_fwd(time s) | h_rev(time T-1-s)].
    """
    n = xg_all.shape[0]
    G = 8 * H
    h = jnp.zeros((n, 2 * H), jnp.float32)
    c = jnp.zeros((n, 2 * H), jnp.float32)
    outs = []
    for s in range(T):                           # T is small & static: keep unrolled
        pre = xg_all[:, s * G:(s + 1) * G] + jnp.dot(
            h.astype(MATMUL_DTYPE), wh, preferred_element_type=jnp.float32)
        # Single full-width sigmoid (one EUP push); tanh lanes recovered by FMA.
        sig = jax.nn.sigmoid(pre)
        act = sig * g_scale + g_shift
        i2 = act[:, 0 * H:2 * H]
        f2 = act[:, 2 * H:4 * H]
        g2 = act[:, 4 * H:6 * H]
        o2 = act[:, 6 * H:8 * H]
        c = f2 * c + i2 * g2
        h = o2 * jnp.tanh(c)
        outs.append(h)
    return outs


def _forward_core(x_flat, wx0, b0, wh0, wx1, b1, wh1, cls_w, cls_b,
                  *, T=MAX_TOKS, H=HIDDEN):
    """Hot path on plain arrays. x_flat: (n, T*H) in MATMUL_DTYPE."""
    n = x_flat.shape[0]
    mm = MATMUL_DTYPE
    # Per-lane scale/shift turning one sigmoid into tanh on the g-gate lanes.
    # Built ONCE per kernel invocation and reused by both layers / all steps
    # (JAX does not CSE iota/broadcast, so keep this out of the loops).
    col = jax.lax.broadcasted_iota(jnp.int32, (n, 8 * H), 1)
    is_g = (col >= 4 * H) & (col < 6 * H)
    g_scale = jnp.where(is_g, 2.0, 1.0)
    g_shift = jnp.where(is_g, -1.0, 0.0)

    # Layer 0: all input-to-gate projections (every timestep, both directions)
    # in ONE matmul: (n, T*H) @ (T*H, T*8H).
    xg0 = jnp.dot(x_flat, wx0, preferred_element_type=jnp.float32) + b0
    l0 = _bilstm_fused_layer(xg0, wh0, g_scale, g_shift, T, H)
    # TODO(synk): inter-layer LSTM dropout (p=0.3) is identity at inference.
    # Layer 1: pack the per-step fused layer-0 states once along lanes, then
    # again ONE matmul for all of its input-to-gate projections.
    l0_all = jnp.concatenate(l0, axis=1)                       # (n, T*2H)
    xg1 = jnp.dot(l0_all.astype(mm), wx1, preferred_element_type=jnp.float32) + b1
    l1 = _bilstm_fused_layer(xg1, wh1, g_scale, g_shift, T, H)
    # Final fused state == [forward_last_hidden | backward_last_hidden]: no concat.
    h_final = l1[-1]                                           # (n, 2H)
    # proj @ classifier fused at pack time (no nonlinearity between them).
    # TODO(synk): nn.Dropout(0.3) before the classifier is identity at inference.
    logits = jnp.dot(h_final.astype(mm), cls_w, preferred_element_type=jnp.float32) + cls_b
    return jax.nn.sigmoid(logits)                              # (n, LABEL_PAD)


# ---------------------------------------------------------------------------
# Pallas kernel + wrapper
# ---------------------------------------------------------------------------
def classifier_kernel(x_ref, wx0_ref, b0_ref, wh0_ref, wx1_ref, b1_ref, wh1_ref,
                      clsw_ref, clsb_ref, out_ref):
    out = _forward_core(x_ref[...], wx0_ref[...], b0_ref[...], wh0_ref[...],
                        wx1_ref[...], b1_ref[...], wh1_ref[...],
                        clsw_ref[...], clsb_ref[...])
    out_ref[...] = out.astype(out_ref.dtype)


def run_classifier(x_flat, packed, *, tile_n=None):
    """x_flat: (N, T*H) -> (N, LABEL_PAD) bf16 sigmoid probs (pad lanes = 0.5)."""
    N, TH = x_flat.shape
    x_flat = x_flat.astype(MATMUL_DTYPE)   # half the streamed-input DMA bytes
    if tile_n is None:
        if N <= 512:
            # Latency-bound at small N: one grid step (splitting across v7x's
            # two TCs / multiple pipeline steps is pure overhead here).
            tile_n = N
        else:
            # Big-N: 512-row tiles amortize the ~0.35us/step overhead, give
            # >=2 parallel steps for v7x megacore, and stay well under the
            # 32 MiB scoped VMEM limit (v7x has only 64 MiB physical VMEM).
            tile_n = 512
            while tile_n > 8 and N % tile_n != 0:
                tile_n //= 2
            if N % tile_n != 0:
                tile_n = N
    assert N % tile_n == 0, (N, tile_n)

    param_list = [packed[k] for k in PACKED_ORDER]

    def const_spec(arr):
        return pl.BlockSpec(arr.shape, lambda i: (0, 0))       # all params are 2D

    in_specs = [pl.BlockSpec((tile_n, TH), lambda i: (i, 0))]  # lane-dense x block
    in_specs += [const_spec(p) for p in param_list]

    grid_spec = pltpu.PrefetchScalarGridSpec(
        num_scalar_prefetch=0,
        grid=(N // tile_n,),
        in_specs=in_specs,
        out_specs=pl.BlockSpec((tile_n, LABEL_PAD), lambda i: (i, 0)),
    )
    return pl.pallas_call(
        classifier_kernel,
        out_shape=jax.ShapeDtypeStruct((N, LABEL_PAD), jnp.bfloat16),
        grid_spec=grid_spec,
        compiler_params=pltpu.CompilerParams(
            dimension_semantics=("parallel",),
            vmem_limit_bytes=32 * 1024 * 1024,
        ),
    )(x_flat, *param_list)


# ---------------------------------------------------------------------------
# Parameter construction (PyTorch-equivalent init) and MXU-friendly repacking
# ---------------------------------------------------------------------------
def init_params(key):
    H, L = HIDDEN, NUM_LABELS
    ks = jax.random.split(key, 11)
    ortho = jax.nn.initializers.orthogonal()

    def lstm_dir(k1, k2, in_dim):
        w_ih_t = ortho(k1, (4 * H, in_dim), jnp.float32).T   # torch stores (4H, in)
        w_hh_t = ortho(k2, (4 * H, H), jnp.float32).T
        b = jnp.zeros((1, 4 * H), jnp.float32)               # b_ih + b_hh, zero init
        return w_ih_t, w_hh_t, b

    p = {}
    p["w_ih0f"], p["w_hh0f"], p["b0f"] = lstm_dir(ks[0], ks[1], H)
    p["w_ih0r"], p["w_hh0r"], p["b0r"] = lstm_dir(ks[2], ks[3], H)
    p["w_ih1f"], p["w_hh1f"], p["b1f"] = lstm_dir(ks[4], ks[5], 2 * H)
    p["w_ih1r"], p["w_hh1r"], p["b1r"] = lstm_dir(ks[6], ks[7], 2 * H)
    p["proj_w"] = jax.random.uniform(ks[8], (2 * H, H), jnp.float32, -1.0, 1.0)
    bound = 1.0 / (H ** 0.5)
    p["cls_w"] = jax.random.uniform(ks[9], (H, L), jnp.float32, -bound, bound)
    p["cls_b"] = jax.random.uniform(ks[10], (1, L), jnp.float32, -bound, bound)
    return p


def pack_params(p, *, T=MAX_TOKS, H=HIDDEN, L=NUM_LABELS, L_pad=LABEL_PAD):
    """Repack raw (PyTorch-layout) params into fused MXU/lane-friendly weights.

    Per-step fused gate layout (8H lanes, gate-major over both directions):
        [ i_f i_r | f_f f_r | g_f g_r | o_f o_r ]
    The g-gate columns/biases carry a 2x fold so the kernel can use
    tanh(z) = 2*sigmoid(2z) - 1 with a single full-width sigmoid per step.
    """
    G = 8 * H

    def g_cols_scale(num_steps):
        col = jnp.arange(num_steps * G)
        is_g = ((col % G) >= 4 * H) & ((col % G) < 6 * H)
        return jnp.where(is_g, 2.0, 1.0).astype(jnp.float32)

    def wh_fused(w_hh_f, w_hh_r):
        # (2H, 8H): rows 0:H act on h_fwd, rows H:2H on h_rev (block-diag per gate).
        wh = jnp.zeros((2 * H, G), jnp.float32)
        for g in range(4):
            wh = wh.at[0:H, g * 2 * H:g * 2 * H + H].set(w_hh_f[:, g * H:(g + 1) * H])
            wh = wh.at[H:2 * H, g * 2 * H + H:(g + 1) * 2 * H].set(w_hh_r[:, g * H:(g + 1) * H])
        return wh * g_cols_scale(1)[None, :]

    def bias_fused(b_f, b_r):
        cols = []
        for g in range(4):
            cols += [b_f[:, g * H:(g + 1) * H], b_r[:, g * H:(g + 1) * H]]
        b = jnp.concatenate(cols, axis=1)              # (1, 8H)
        b = jnp.tile(b, (1, T))                        # (1, T*8H) — added once
        return b * g_cols_scale(T)[None, :]

    # Layer-0 input projection: x_flat (n, T*H) @ wx0 (T*H, T*8H).
    # At step s the fwd half reads x(time s), the rev half x(time T-1-s).
    wx0 = jnp.zeros((T * H, T * G), jnp.float32)
    for s in range(T):
        r = T - 1 - s
        for g in range(4):
            cf = slice(s * G + g * 2 * H, s * G + g * 2 * H + H)
            cr = slice(s * G + g * 2 * H + H, s * G + (g + 1) * 2 * H)
            wx0 = wx0.at[s * H:(s + 1) * H, cf].set(p["w_ih0f"][:, g * H:(g + 1) * H])
            wx0 = wx0.at[r * H:(r + 1) * H, cr].set(p["w_ih0r"][:, g * H:(g + 1) * H])
    wx0 = wx0 * g_cols_scale(T)[None, :]

    # Layer-1 input projection consumes the packed layer-0 outputs l0_all
    # (n, T*2H); lane block s of l0_all holds [h_fwd(time s) | h_rev(time T-1-s)].
    def hf_rows(t):          # rows of wx1 (= lanes of l0_all) holding h_fwd(time t)
        return slice(t * 2 * H, t * 2 * H + H)

    def hr_rows(t):          # rows holding h_rev(time t) (produced at step T-1-t)
        s = T - 1 - t
        return slice(s * 2 * H + H, (s + 1) * 2 * H)

    wx1 = jnp.zeros((T * 2 * H, T * G), jnp.float32)
    for s in range(T):
        t_f, t_r = s, T - 1 - s          # timesteps consumed by fwd / rev at step s
        for g in range(4):
            cf = slice(s * G + g * 2 * H, s * G + g * 2 * H + H)
            cr = slice(s * G + g * 2 * H + H, s * G + (g + 1) * 2 * H)
            wx1 = wx1.at[hf_rows(t_f), cf].set(p["w_ih1f"][0:H, g * H:(g + 1) * H])
            wx1 = wx1.at[hr_rows(t_f), cf].set(p["w_ih1f"][H:2 * H, g * H:(g + 1) * H])
            wx1 = wx1.at[hf_rows(t_r), cr].set(p["w_ih1r"][0:H, g * H:(g + 1) * H])
            wx1 = wx1.at[hr_rows(t_r), cr].set(p["w_ih1r"][H:2 * H, g * H:(g + 1) * H])
    wx1 = wx1 * g_cols_scale(T)[None, :]

    # Fuse proj @ classifier (no nonlinearity between at inference) in f32,
    # pad labels 5 -> 128 lanes so the epilogue matmul/store stay lane-dense.
    cls_w_pad = jnp.zeros((H, L_pad), jnp.float32).at[:, :L].set(p["cls_w"])
    cls_w_fused = p["proj_w"] @ cls_w_pad                      # (2H, L_pad), f32
    cls_b = jnp.zeros((1, L_pad), jnp.float32).at[:, :L].set(p["cls_b"])

    mm = MATMUL_DTYPE
    return {
        "wx0": wx0.astype(mm), "b0": bias_fused(p["b0f"], p["b0r"]),
        "wh0": wh_fused(p["w_hh0f"], p["w_hh0r"]).astype(mm),
        "wx1": wx1.astype(mm), "b1": bias_fused(p["b1f"], p["b1r"]),
        "wh1": wh_fused(p["w_hh1f"], p["w_hh1r"]).astype(mm),
        "cls_w": cls_w_fused.astype(mm),   # single f32->bf16 rounding stage
        "cls_b": cls_b,                    # f32: added after f32-accumulated matmul
    }


# ---------------------------------------------------------------------------
# Straightforward (unfused, f32) reference of the PyTorch forward, used to
# cross-check the weight packing / direction alignment / tanh fold.
# ---------------------------------------------------------------------------
def _lstm_dir_ref(xs, w_ih_t, w_hh_t, b):
    H = w_hh_t.shape[0]
    n = xs[0].shape[0]
    h = jnp.zeros((n, H), jnp.float32)
    c = jnp.zeros((n, H), jnp.float32)
    outs = []
    for xt in xs:
        gates = xt @ w_ih_t + h @ w_hh_t + b
        i = jax.nn.sigmoid(gates[:, 0 * H:1 * H])
        f = jax.nn.sigmoid(gates[:, 1 * H:2 * H])
        g = jnp.tanh(gates[:, 2 * H:3 * H])
        o = jax.nn.sigmoid(gates[:, 3 * H:4 * H])
        c = f * c + i * g
        h = o * jnp.tanh(c)
        outs.append(h)
    return outs


def _reference_naive(x, p):
    N, T, H = x.shape
    xs = [x[:, t, :] for t in range(T)]
    f0 = _lstm_dir_ref(xs, p["w_ih0f"], p["w_hh0f"], p["b0f"])
    r0 = _lstm_dir_ref(xs[::-1], p["w_ih0r"], p["w_hh0r"], p["b0r"])[::-1]
    layer0 = [jnp.concatenate([f0[t], r0[t]], axis=-1) for t in range(T)]
    f1 = _lstm_dir_ref(layer0, p["w_ih1f"], p["w_hh1f"], p["b1f"])
    r1 = _lstm_dir_ref(layer0[::-1], p["w_ih1r"], p["w_hh1r"], p["b1r"])
    concat = jnp.concatenate([f1[-1], r1[-1]], axis=-1)
    combined = concat @ p["proj_w"]
    logits = combined @ p["cls_w"] + p["cls_b"]
    return jax.nn.sigmoid(logits)


if __name__ == "__main__":
    key = jax.random.PRNGKey(0)
    k_emb, k_ids, k_params = jax.random.split(key, 3)

    emb_table = 0.1 * jax.random.normal(k_emb, (VOCAB, HIDDEN), jnp.float32)
    token_ids = jax.random.randint(k_ids, (BATCH, MAX_WORDS, MAX_TOKS), 0, VOCAB)
    # tokens_per_word is unused: the reference module's nn.LSTM also runs over
    # the pad-embedded positions (no packed sequence), so no masking is needed.
    tokens_per_word = jnp.full((BATCH, MAX_WORDS), MAX_TOKS, jnp.int32)
    params = init_params(k_params)
    packed = pack_params(params)

    # TODO(synk): the pretrained ELECTRA/BERT encoder (self.model) and
    # slice_3d_tensors (undefined in the reference source) are replaced by a
    # simple embedding lookup producing already-sliced (B, W, T, H) features.
    hidden = emb_table[token_ids]                                   # (B, W, T, H)
    N = BATCH * MAX_WORDS
    x = hidden.reshape(N, MAX_TOKS, HIDDEN)                         # (N, T, H)
    x_flat = x.reshape(N, MAX_TOKS * HIDDEN)                        # lane-dense (N, 128)

    out_pad = run_classifier(x_flat, packed)                        # (N, 128) bf16
    out_pad = jax.block_until_ready(out_pad)
    out = out_pad[:, :NUM_LABELS].astype(jnp.float32).reshape(
        BATCH, MAX_WORDS, NUM_LABELS)

    # Reference 1: identical packed/fused math in plain JAX; only the kernel's
    # bf16 output rounding separates it from `out`.
    ref_packed = _forward_core(x_flat.astype(MATMUL_DTYPE),
                               *[packed[k] for k in PACKED_ORDER])
    ref_packed = ref_packed[:, :NUM_LABELS].reshape(BATCH, MAX_WORDS, NUM_LABELS)
    # Reference 2: unfused f32 LSTM math (validates packing / direction
    # alignment / the tanh-via-sigmoid fold; loose tolerance for bf16 operands).
    ref_naive = _reference_naive(x, params).reshape(BATCH, MAX_WORDS, NUM_LABELS)

    assert out.shape == (BATCH, MAX_WORDS, NUM_LABELS)
    assert jnp.allclose(out, ref_packed, atol=8e-3, rtol=0.0), "kernel/packed-ref mismatch"
    assert jnp.allclose(ref_packed, ref_naive, atol=5e-2, rtol=0.0), "packed/naive-ref mismatch"

    print("KERNEL_OK")
</pallas_src>

<mosaic_0001>
module attributes {stable_mosaic.version = 11 : i64} {
  func.func @classifier_kernel(%arg0: i32, %arg1: memref<16x128xbf16, #tpu.memory_space<vmem>>, %arg2: memref<128x1024xbf16, #tpu.memory_space<vmem>>, %arg3: memref<1x1024xf32, #tpu.memory_space<vmem>>, %arg4: memref<64x256xbf16, #tpu.memory_space<vmem>>, %arg5: memref<256x1024xbf16, #tpu.memory_space<vmem>>, %arg6: memref<1x1024xf32, #tpu.memory_space<vmem>>, %arg7: memref<64x256xbf16, #tpu.memory_space<vmem>>, %arg8: memref<64x128xbf16, #tpu.memory_space<vmem>>, %arg9: memref<1x128xf32, #tpu.memory_space<vmem>>, %arg10: memref<16x128xbf16, #tpu.memory_space<vmem>>) attributes {dimension_semantics = [#tpu.dimension_semantics<parallel>], iteration_bounds = array<i64: 1>, scalar_prefetch = 0 : i64, scratch_operands = 0 : i64, tpu.core_type = #tpu.core_type<tc>, window_params = [{transform_indices = @transform_0, window_bounds = array<i64: 16, 128>}, {pipeline_mode = #tpu.pipeline_mode<synchronous>, transform_indices = @transform_1, window_bounds = array<i64: 128, 1024>}, {pipeline_mode = #tpu.pipeline_mode<synchronous>, transform_indices = @transform_2, window_bounds = array<i64: 1, 1024>}, {pipeline_mode = #tpu.pipeline_mode<synchronous>, transform_indices = @transform_3, window_bounds = array<i64: 64, 256>}, {pipeline_mode = #tpu.pipeline_mode<synchronous>, transform_indices = @transform_4, window_bounds = array<i64: 256, 1024>}, {pipeline_mode = #tpu.pipeline_mode<synchronous>, transform_indices = @transform_5, window_bounds = array<i64: 1, 1024>}, {pipeline_mode = #tpu.pipeline_mode<synchronous>, transform_indices = @transform_6, window_bounds = array<i64: 64, 256>}, {pipeline_mode = #tpu.pipeline_mode<synchronous>, transform_indices = @transform_7, window_bounds = array<i64: 64, 128>}, {pipeline_mode = #tpu.pipeline_mode<synchronous>, transform_indices = @transform_8, window_bounds = array<i64: 1, 128>}, {transform_indices = @transform_9, window_bounds = array<i64: 16, 128>}]} {
    %c0 = arith.constant 0 : index
    %c0_0 = arith.constant 0 : index
    %0 = vector.load %arg1[%c0, %c0_0] : memref<16x128xbf16, #tpu.memory_space<vmem>>, vector<16x128xbf16>
    %c0_1 = arith.constant 0 : index
    %c0_2 = arith.constant 0 : index
    %1 = vector.load %arg2[%c0_1, %c0_2] : memref<128x1024xbf16, #tpu.memory_space<vmem>>, vector<128x1024xbf16>
    %c0_3 = arith.constant 0 : index
    %c0_4 = arith.constant 0 : index
    %2 = vector.load %arg3[%c0_3, %c0_4] : memref<1x1024xf32, #tpu.memory_space<vmem>>, vector<1x1024xf32>
    %c0_5 = arith.constant 0 : index
    %c0_6 = arith.constant 0 : index
    %3 = vector.load %arg4[%c0_5, %c0_6] : memref<64x256xbf16, #tpu.memory_space<vmem>>, vector<64x256xbf16>
    %c0_7 = arith.constant 0 : index
    %c0_8 = arith.constant 0 : index
    %4 = vector.load %arg5[%c0_7, %c0_8] : memref<256x1024xbf16, #tpu.memory_space<vmem>>, vector<256x1024xbf16>
    %c0_9 = arith.constant 0 : index
    %c0_10 = arith.constant 0 : index
    %5 = vector.load %arg6[%c0_9, %c0_10] : memref<1x1024xf32, #tpu.memory_space<vmem>>, vector<1x1024xf32>
    %c0_11 = arith.constant 0 : index
    %c0_12 = arith.constant 0 : index
    %6 = vector.load %arg7[%c0_11, %c0_12] : memref<64x256xbf16, #tpu.memory_space<vmem>>, vector<64x256xbf16>
    %c0_13 = arith.constant 0 : index
    %c0_14 = arith.constant 0 : index
    %7 = vector.load %arg8[%c0_13, %c0_14] : memref<64x128xbf16, #tpu.memory_space<vmem>>, vector<64x128xbf16>
    %c0_15 = arith.constant 0 : index
    %c0_16 = arith.constant 0 : index
    %8 = vector.load %arg9[%c0_15, %c0_16] : memref<1x128xf32, #tpu.memory_space<vmem>>, vector<1x128xf32>
    %9 = tpu.iota {dimensions = array<i32: 1>} : vector<16x256xi32>
    %c128_i32 = arith.constant 128 : i32
    %10 = vector.broadcast %c128_i32 : i32 to vector<16x256xi32>
    %11 = arith.cmpi sge, %9, %10 : vector<16x256xi32>
    %c192_i32 = arith.constant 192 : i32
    %12 = vector.broadcast %c192_i32 : i32 to vector<16x256xi32>
    %13 = arith.cmpi slt, %9, %12 : vector<16x256xi32>
    %14 = arith.andi %11, %13 : vector<16x256xi1>
    %cst = arith.constant 2.000000e+00 : f32
    %cst_17 = arith.constant 1.000000e+00 : f32
    %15 = vector.broadcast %cst : f32 to vector<16x256xf32>
    %16 = vector.broadcast %cst_17 : f32 to vector<16x256xf32>
    %17 = arith.select %14, %15, %16 : vector<16x256xi1>, vector<16x256xf32>
    %cst_18 = arith.constant -1.000000e+00 : f32
    %cst_19 = arith.constant 0.000000e+00 : f32
    %18 = vector.broadcast %cst_18 : f32 to vector<16x256xf32>
    %19 = vector.broadcast %cst_19 : f32 to vector<16x256xf32>
    %20 = arith.select %14, %18, %19 : vector<16x256xi1>, vector<16x256xf32>
    %cst_20 = arith.constant dense<0.000000e+00> : vector<16x1024xf32>
    %21 = tpu.matmul %0, %1, %cst_20 {dimension_numbers = #tpu.dot_dimension_numbers<[1], [0], [0], [1], [0, 0, 1, 1], [], []>} : vector<16x128xbf16>, vector<128x1024xbf16>, vector<16x1024xf32> -> vector<16x1024xf32>
    %22 = vector.broadcast %2 : vector<1x1024xf32> to vector<16x1024xf32>
    %23 = arith.addf %21, %22 : vector<16x1024xf32>
    %cst_21 = arith.constant 0.000000e+00 : f32
    %24 = vector.broadcast %cst_21 : f32 to vector<16x64xf32>
    %cst_22 = arith.constant 0.000000e+00 : f32
    %25 = vector.broadcast %cst_22 : f32 to vector<16x64xf32>
    %26 = vector.extract_strided_slice %23 {offsets = [0, 0], sizes = [16, 256], strides = [1, 1]} : vector<16x1024xf32> to vector<16x256xf32>
    %27 = arith.truncf %24 : vector<16x64xf32> to vector<16x64xbf16>
    %cst_23 = arith.constant dense<0.000000e+00> : vector<16x256xf32>
    %28 = tpu.matmul %27, %3, %cst_23 {dimension_numbers = #tpu.dot_dimension_numbers<[1], [0], [0], [1], [0, 0, 1, 1], [], []>} : vector<16x64xbf16>, vector<64x256xbf16>, vector<16x256xf32> -> vector<16x256xf32>
    %29 = arith.addf %26, %28 : vector<16x256xf32>
    %30 = arith.negf %29 : vector<16x256xf32>
    %31 = math.exp %30 : vector<16x256xf32>
    %cst_24 = arith.constant 1.000000e+00 : f32
    %32 = vector.broadcast %cst_24 : f32 to vector<16x256xf32>
    %33 = arith.addf %32, %31 : vector<16x256xf32>
    %34 = arith.divf %32, %33 : vector<16x256xf32>
    %35 = arith.mulf %34, %17 : vector<16x256xf32>
    %36 = arith.addf %35, %20 : vector<16x256xf32>
    %37 = vector.extract_strided_slice %36 {offsets = [0, 0], sizes = [16, 64], strides = [1, 1]} : vector<16x256xf32> to vector<16x64xf32>
    %38 = vector.extract_strided_slice %36 {offsets = [0, 64], sizes = [16, 64], strides = [1, 1]} : vector<16x256xf32> to vector<16x64xf32>
    %39 = vector.extract_strided_slice %36 {offsets = [0, 128], sizes = [16, 64], strides = [1, 1]} : vector<16x256xf32> to vector<16x64xf32>
    %40 = vector.extract_strided_slice %36 {offsets = [0, 192], sizes = [16, 64], strides = [1, 1]} : vector<16x256xf32> to vector<16x64xf32>
    %41 = arith.mulf %38, %25 : vector<16x64xf32>
    %42 = arith.mulf %37, %39 : vector<16x64xf32>
    %43 = arith.addf %41, %42 : vector<16x64xf32>
    %44 = math.tanh %43 : vector<16x64xf32>
    %45 = arith.mulf %40, %44 : vector<16x64xf32>
    %46 = vector.extract_strided_slice %23 {offsets = [0, 256], sizes = [16, 256], strides = [1, 1]} : vector<16x1024xf32> to vector<16x256xf32>
    %47 = arith.truncf %45 : vector<16x64xf32> to vector<16x64xbf16>
    %cst_25 = arith.constant dense<0.000000e+00> : vector<16x256xf32>
    %48 = tpu.matmul %47, %3, %cst_25 {dimension_numbers = #tpu.dot_dimension_numbers<[1], [0], [0], [1], [0, 0, 1, 1], [], []>} : vector<16x64xbf16>, vector<64x256xbf16>, vector<16x256xf32> -> vector<16x256xf32>
    %49 = arith.addf %46, %48 : vector<16x256xf32>
    %50 = arith.negf %49 : vector<16x256xf32>
    %51 = math.exp %50 : vector<16x256xf32>
    %cst_26 = arith.constant 1.000000e+00 : f32
    %52 = vector.broadcast %cst_26 : f32 to vector<16x256xf32>
    %53 = arith.addf %52, %51 : vector<16x256xf32>
    %54 = arith.divf %52, %53 : vector<16x256xf32>
    %55 = arith.mulf %54, %17 : vector<16x256xf32>
    %56 = arith.addf %55, %20 : vector<16x256xf32>
    %57 = vector.extract_strided_slice %56 {offsets = [0, 0], sizes = [16, 64], strides = [1, 1]} : vector<16x256xf32> to vector<16x64xf32>
    %58 = vector.extract_strided_slice %56 {offsets = [0, 64], sizes = [16, 64], strides = [1, 1]} : vector<16x256xf32> to vector<16x64xf32>
    %59 = vector.extract_strided_slice %56 {offsets = [0, 128], sizes = [16, 64], strides = [1, 1]} : vector<16x256xf32> to vector<16x64xf32>
    %60 = vector.extract_strided_slice %56 {offsets = [0, 192], sizes = [16, 64], strides = [1, 1]} : vector<16x256xf32> to vector<16x64xf32>
    %61 = arith.mulf %58, %43 : vector<16x64xf32>
    %62 = arith.mulf %57, %59 : vector<16x64xf32>
    %63 = arith.addf %61, %62 : vector<16x64xf32>
    %64 = math.tanh %63 : vector<16x64xf32>
    %65 = arith.mulf %60, %64 : vector<16x64xf32>
    %66 = vector.extract_strided_slice %23 {offsets = [0, 512], sizes = [16, 256], strides = [1, 1]} : vector<16x1024xf32> to vector<16x256xf32>
    %67 = arith.truncf %65 : vector<16x64xf32> to vector<16x64xbf16>
    %cst_27 = arith.constant dense<0.000000e+00> : vector<16x256xf32>
    %68 = tpu.matmul %67, %3, %cst_27 {dimension_numbers = #tpu.dot_dimension_numbers<[1], [0], [0], [1], [0, 0, 1, 1], [], []>} : vector<16x64xbf16>, vector<64x256xbf16>, vector<16x256xf32> -> vector<16x256xf32>
    %69 = arith.addf %66, %68 : vector<16x256xf32>
    %70 = arith.negf %69 : vector<16x256xf32>
    %71 = math.exp %70 : vector<16x256xf32>
    %cst_28 = arith.constant 1.000000e+00 : f32
    %72 = vector.broadcast %cst_28 : f32 to vector<16x256xf32>
    %73 = arith.addf %72, %71 : vector<16x256xf32>
    %74 = arith.divf %72, %73 : vector<16x256xf32>
    %75 = arith.mulf %74, %17 : vector<16x256xf32>
    %76 = arith.addf %75, %20 : vector<16x256xf32>
    %77 = vector.extract_strided_slice %76 {offsets = [0, 0], sizes = [16, 64], strides = [1, 1]} : vector<16x256xf32> to vector<16x64xf32>
    %78 = vector.extract_strided_slice %76 {offsets = [0, 64], sizes = [16, 64], strides = [1, 1]} : vector<16x256xf32> to vector<16x64xf32>
    %79 = vector.extract_strided_slice %76 {offsets = [0, 128], sizes = [16, 64], strides = [1, 1]} : vector<16x256xf32> to vector<16x64xf32>
    %80 = vector.extract_strided_slice %76 {offsets = [0, 192], sizes = [16, 64], strides = [1, 1]} : vector<16x256xf32> to vector<16x64xf32>
    %81 = arith.mulf %78, %63 : vector<16x64xf32>
    %82 = arith.mulf %77, %79 : vector<16x64xf32>
    %83 = arith.addf %81, %82 : vector<16x64xf32>
    %84 = math.tanh %83 : vector<16x64xf32>
    %85 = arith.mulf %80, %84 : vector<16x64xf32>
    %86 = vector.extract_strided_slice %23 {offsets = [0, 768], sizes = [16, 256], strides = [1, 1]} : vector<16x1024xf32> to vector<16x256xf32>
    %87 = arith.truncf %85 : vector<16x64xf32> to vector<16x64xbf16>
    %cst_29 = arith.constant dense<0.000000e+00> : vector<16x256xf32>
    %88 = tpu.matmul %87, %3, %cst_29 {dimension_numbers = #tpu.dot_dimension_numbers<[1], [0], [0], [1], [0, 0, 1, 1], [], []>} : vector<16x64xbf16>, vector<64x256xbf16>, vector<16x256xf32> -> vector<16x256xf32>
    %89 = arith.addf %86, %88 : vector<16x256xf32>
    %90 = arith.negf %89 : vector<16x256xf32>
    %91 = math.exp %90 : vector<16x256xf32>
    %cst_30 = arith.constant 1.000000e+00 : f32
    %92 = vector.broadcast %cst_30 : f32 to vector<16x256xf32>
    %93 = arith.addf %92, %91 : vector<16x256xf32>
    %94 = arith.divf %92, %93 : vector<16x256xf32>
    %95 = arith.mulf %94, %17 : vector<16x256xf32>
    %96 = arith.addf %95, %20 : vector<16x256xf32>
    %97 = vector.extract_strided_slice %96 {offsets = [0, 0], sizes = [16, 64], strides = [1, 1]} : vector<16x256xf32> to vector<16x64xf32>
    %98 = vector.extract_strided_slice %96 {offsets = [0, 64], sizes = [16, 64], strides = [1, 1]} : vector<16x256xf32> to vector<16x64xf32>
    %99 = vector.extract_strided_slice %96 {offsets = [0, 128], sizes = [16, 64], strides = [1, 1]} : vector<16x256xf32> to vector<16x64xf32>
    %100 = vector.extract_strided_slice %96 {offsets = [0, 192], sizes = [16, 64], strides = [1, 1]} : vector<16x256xf32> to vector<16x64xf32>
    %101 = arith.mulf %98, %83 : vector<16x64xf32>
    %102 = arith.mulf %97, %99 : vector<16x64xf32>
    %103 = arith.addf %101, %102 : vector<16x64xf32>
    %104 = math.tanh %103 : vector<16x64xf32>
    %105 = arith.mulf %100, %104 : vector<16x64xf32>
    %106 = tpu.concatenate %45, %65, %85, %105 in 1 : vector<16x64xf32>, vector<16x64xf32>, vector<16x64xf32>, vector<16x64xf32> -> vector<16x256xf32>
    %107 = arith.truncf %106 : vector<16x256xf32> to vector<16x256xbf16>
    %cst_31 = arith.constant dense<0.000000e+00> : vector<16x1024xf32>
    %108 = tpu.matmul %107, %4, %cst_31 {dimension_numbers = #tpu.dot_dimension_numbers<[1], [0], [0], [1], [0, 0, 1, 1], [], []>} : vector<16x256xbf16>, vector<256x1024xbf16>, vector<16x1024xf32> -> vector<16x1024xf32>
    %109 = vector.broadcast %5 : vector<1x1024xf32> to vector<16x1024xf32>
    %110 = arith.addf %108, %109 : vector<16x1024xf32>
    %cst_32 = arith.constant 0.000000e+00 : f32
    %111 = vector.broadcast %cst_32 : f32 to vector<16x64xf32>
    %cst_33 = arith.constant 0.000000e+00 : f32
    %112 = vector.broadcast %cst_33 : f32 to vector<16x64xf32>
    %113 = vector.extract_strided_slice %110 {offsets = [0, 0], sizes = [16, 256], strides = [1, 1]} : vector<16x1024xf32> to vector<16x256xf32>
    %114 = arith.truncf %111 : vector<16x64xf32> to vector<16x64xbf16>
    %cst_34 = arith.constant dense<0.000000e+00> : vector<16x256xf32>
    %115 = tpu.matmul %114, %6, %cst_34 {dimension_numbers = #tpu.dot_dimension_numbers<[1], [0], [0], [1], [0, 0, 1, 1], [], []>} : vector<16x64xbf16>, vector<64x256xbf16>, vector<16x256xf32> -> vector<16x256xf32>
    %116 = arith.addf %113, %115 : vector<16x256xf32>
    %117 = arith.negf %116 : vector<16x256xf32>
    %118 = math.exp %117 : vector<16x256xf32>
    %cst_35 = arith.constant 1.000000e+00 : f32
    %119 = vector.broadcast %cst_35 : f32 to vector<16x256xf32>
    %120 = arith.addf %119, %118 : vector<16x256xf32>
    %121 = arith.divf %119, %120 : vector<16x256xf32>
    %122 = arith.mulf %121, %17 : vector<16x256xf32>
    %123 = arith.addf %122, %20 : vector<16x256xf32>
    %124 = vector.extract_strided_slice %123 {offsets = [0, 0], sizes = [16, 64], strides = [1, 1]} : vector<16x256xf32> to vector<16x64xf32>
    %125 = vector.extract_strided_slice %123 {offsets = [0, 64], sizes = [16, 64], strides = [1, 1]} : vector<16x256xf32> to vector<16x64xf32>
    %126 = vector.extract_strided_slice %123 {offsets = [0, 128], sizes = [16, 64], strides = [1, 1]} : vector<16x256xf32> to vector<16x64xf32>
    %127 = vector.extract_strided_slice %123 {offsets = [0, 192], sizes = [16, 64], strides = [1, 1]} : vector<16x256xf32> to vector<16x64xf32>
    %128 = arith.mulf %125, %112 : vector<16x64xf32>
    %129 = arith.mulf %124, %126 : vector<16x64xf32>
    %130 = arith.addf %128, %129 : vector<16x64xf32>
    %131 = math.tanh %130 : vector<16x64xf32>
    %132 = arith.mulf %127, %131 : vector<16x64xf32>
    %133 = vector.extract_strided_slice %110 {offsets = [0, 256], sizes = [16, 256], strides = [1, 1]} : vector<16x1024xf32> to vector<16x256xf32>
    %134 = arith.truncf %132 : vector<16x64xf32> to vector<16x64xbf16>
    %cst_36 = arith.constant dense<0.000000e+00> : vector<16x256xf32>
    %135 = tpu.matmul %134, %6, %cst_36 {dimension_numbers = #tpu.dot_dimension_numbers<[1], [0], [0], [1], [0, 0, 1, 1], [], []>} : vector<16x64xbf16>, vector<64x256xbf16>, vector<16x256xf32> -> vector<16x256xf32>
    %136 = arith.addf %133, %135 : vector<16x256xf32>
    %137 = arith.negf %136 : vector<16x256xf32>
    %138 = math.exp %137 : vector<16x256xf32>
    %cst_37 = arith.constant 1.000000e+00 : f32
    %139 = vector.broadcast %cst_37 : f32 to vector<16x256xf32>
    %140 = arith.addf %139, %138 : vector<16x256xf32>
    %141 = arith.divf %139, %140 : vector<16x256xf32>
    %142 = arith.mulf %141, %17 : vector<16x256xf32>
    %143 = arith.addf %142, %20 : vector<16x256xf32>
    %144 = vector.extract_strided_slice %143 {offsets = [0, 0], sizes = [16, 64], strides = [1, 1]} : vector<16x256xf32> to vector<16x64xf32>
    %145 = vector.extract_strided_slice %143 {offsets = [0, 64], sizes = [16, 64], strides = [1, 1]} : vector<16x256xf32> to vector<16x64xf32>
    %146 = vector.extract_strided_slice %143 {offsets = [0, 128], sizes = [16, 64], strides = [1, 1]} : vector<16x256xf32> to vector<16x64xf32>
    %147 = vector.extract_strided_slice %143 {offsets = [0, 192], sizes = [16, 64], strides = [1, 1]} : vector<16x256xf32> to vector<16x64xf32>
    %148 = arith.mulf %145, %130 : vector<16x64xf32>
    %149 = arith.mulf %144, %146 : vector<16x64xf32>
    %150 = arith.addf %148, %149 : vector<16x64xf32>
    %151 = math.tanh %150 : vector<16x64xf32>
    %152 = arith.mulf %147, %151 : vector<16x64xf32>
    %153 = vector.extract_strided_slice %110 {offsets = [0, 512], sizes = [16, 256], strides = [1, 1]} : vector<16x1024xf32> to vector<16x256xf32>
    %154 = arith.truncf %152 : vector<16x64xf32> to vector<16x64xbf16>
    %cst_38 = arith.constant dense<0.000000e+00> : vector<16x256xf32>
    %155 = tpu.matmul %154, %6, %cst_38 {dimension_numbers = #tpu.dot_dimension_numbers<[1], [0], [0], [1], [0, 0, 1, 1], [], []>} : vector<16x64xbf16>, vector<64x256xbf16>, vector<16x256xf32> -> vector<16x256xf32>
    %156 = arith.addf %153, %155 : vector<16x256xf32>
    %157 = arith.negf %156 : vector<16x256xf32>
    %158 = math.exp %157 : vector<16x256xf32>
    %cst_39 = arith.constant 1.000000e+00 : f32
    %159 = vector.broadcast %cst_39 : f32 to vector<16x256xf32>
    %160 = arith.addf %159, %158 : vector<16x256xf32>
    %161 = arith.divf %159, %160 : vector<16x256xf32>
    %162 = arith.mulf %161, %17 : vector<16x256xf32>
    %163 = arith.addf %162, %20 : vector<16x256xf32>
    %164 = vector.extract_strided_slice %163 {offsets = [0, 0], sizes = [16, 64], strides = [1, 1]} : vector<16x256xf32> to vector<16x64xf32>
    %165 = vector.extract_strided_slice %163 {offsets = [0, 64], sizes = [16, 64], strides = [1, 1]} : vector<16x256xf32> to vector<16x64xf32>
    %166 = vector.extract_strided_slice %163 {offsets = [0, 128], sizes = [16, 64], strides = [1, 1]} : vector<16x256xf32> to vector<16x64xf32>
    %167 = vector.extract_strided_slice %163 {offsets = [0, 192], sizes = [16, 64], strides = [1, 1]} : vector<16x256xf32> to vector<16x64xf32>
    %168 = arith.mulf %165, %150 : vector<16x64xf32>
    %169 = arith.mulf %164, %166 : vector<16x64xf32>
    %170 = arith.addf %168, %169 : vector<16x64xf32>
    %171 = math.tanh %170 : vector<16x64xf32>
    %172 = arith.mulf %167, %171 : vector<16x64xf32>
    %173 = vector.extract_strided_slice %110 {offsets = [0, 768], sizes = [16, 256], strides = [1, 1]} : vector<16x1024xf32> to vector<16x256xf32>
    %174 = arith.truncf %172 : vector<16x64xf32> to vector<16x64xbf16>
    %cst_40 = arith.constant dense<0.000000e+00> : vector<16x256xf32>
    %175 = tpu.matmul %174, %6, %cst_40 {dimension_numbers = #tpu.dot_dimension_numbers<[1], [0], [0], [1], [0, 0, 1, 1], [], []>} : vector<16x64xbf16>, vector<64x256xbf16>, vector<16x256xf32> -> vector<16x256xf32>
    %176 = arith.addf %173, %175 : vector<16x256xf32>
    %177 = arith.negf %176 : vector<16x256xf32>
    %178 = math.exp %177 : vector<16x256xf32>
    %cst_41 = arith.constant 1.000000e+00 : f32
    %179 = vector.broadcast %cst_41 : f32 to vector<16x256xf32>
    %180 = arith.addf %179, %178 : vector<16x256xf32>
    %181 = arith.divf %179, %180 : vector<16x256xf32>
    %182 = arith.mulf %181, %17 : vector<16x256xf32>
    %183 = arith.addf %182, %20 : vector<16x256xf32>
    %184 = vector.extract_strided_slice %183 {offsets = [0, 0], sizes = [16, 64], strides = [1, 1]} : vector<16x256xf32> to vector<16x64xf32>
    %185 = vector.extract_strided_slice %183 {offsets = [0, 64], sizes = [16, 64], strides = [1, 1]} : vector<16x256xf32> to vector<16x64xf32>
    %186 = vector.extract_strided_slice %183 {offsets = [0, 128], sizes = [16, 64], strides = [1, 1]} : vector<16x256xf32> to vector<16x64xf32>
    %187 = vector.extract_strided_slice %183 {offsets = [0, 192], sizes = [16, 64], strides = [1, 1]} : vector<16x256xf32> to vector<16x64xf32>
    %188 = arith.mulf %185, %170 : vector<16x64xf32>
    %189 = arith.mulf %184, %186 : vector<16x64xf32>
    %190 = arith.addf %188, %189 : vector<16x64xf32>
    %191 = math.tanh %190 : vector<16x64xf32>
    %192 = arith.mulf %187, %191 : vector<16x64xf32>
    %193 = arith.truncf %192 : vector<16x64xf32> to vector<16x64xbf16>
    %cst_42 = arith.constant dense<0.000000e+00> : vector<16x128xf32>
    %194 = tpu.matmul %193, %7, %cst_42 {dimension_numbers = #tpu.dot_dimension_numbers<[1], [0], [0], [1], [0, 0, 1, 1], [], []>} : vector<16x64xbf16>, vector<64x128xbf16>, vector<16x128xf32> -> vector<16x128xf32>
    %195 = vector.broadcast %8 : vector<1x128xf32> to vector<16x128xf32>
    %196 = arith.addf %194, %195 : vector<16x128xf32>
    %197 = arith.negf %196 : vector<16x128xf32>
    %198 = math.exp %197 : vector<16x128xf32>
    %cst_43 = arith.constant 1.000000e+00 : f32
    %199 = vector.broadcast %cst_43 : f32 to vector<16x128xf32>
    %200 = arith.addf %199, %198 : vector<16x128xf32>
    %201 = arith.divf %199, %200 : vector<16x128xf32>
    %202 = arith.truncf %201 : vector<16x128xf32> to vector<16x128xbf16>
    %c0_44 = arith.constant 0 : index
    %c0_45 = arith.constant 0 : index
    %203 = vector.load %arg10[%c0_44, %c0_45] : memref<16x128xbf16, #tpu.memory_space<vmem>>, vector<16x128xbf16>
    tpu.vector_store %arg10[%c0_44, %c0_45], %202 {strides = array<i32>} : memref<16x128xbf16, #tpu.memory_space<vmem>>, vector<16x128xbf16>,
    return
  }
  func.func @transform_0(%arg0: i32) -> (i32, i32) {
    %c0_i32 = arith.constant 0 : i32
    %c0_i32_0 = arith.constant 0 : i32
    return %arg0, %c0_i32 : i32, i32
  }
  func.func @transform_1(%arg0: i32) -> (i32, i32) {
    %c0_i32 = arith.constant 0 : i32
    %c0_i32_0 = arith.constant 0 : i32
    %c0_i32_1 = arith.constant 0 : i32
    return %c0_i32, %c0_i32_0 : i32, i32
  }
  func.func @transform_2(%arg0: i32) -> (i32, i32) {
    %c0_i32 = arith.constant 0 : i32
    %c0_i32_0 = arith.constant 0 : i32
    %c0_i32_1 = arith.constant 0 : i32
    return %c0_i32, %c0_i32_0 : i32, i32
  }
  func.func @transform_3(%arg0: i32) -> (i32, i32) {
    %c0_i32 = arith.constant 0 : i32
    %c0_i32_0 = arith.constant 0 : i32
    %c0_i32_1 = arith.constant 0 : i32
    return %c0_i32, %c0_i32_0 : i32, i32
  }
  func.func @transform_4(%arg0: i32) -> (i32, i32) {
    %c0_i32 = arith.constant 0 : i32
    %c0_i32_0 = arith.constant 0 : i32
    %c0_i32_1 = arith.constant 0 : i32
    return %c0_i32, %c0_i32_0 : i32, i32
  }
  func.func @transform_5(%arg0: i32) -> (i32, i32) {
    %c0_i32 = arith.constant 0 : i32
    %c0_i32_0 = arith.constant 0 : i32
    %c0_i32_1 = arith.constant 0 : i32
    return %c0_i32, %c0_i32_0 : i32, i32
  }
  func.func @transform_6(%arg0: i32) -> (i32, i32) {
    %c0_i32 = arith.constant 0 : i32
    %c0_i32_0 = arith.constant 0 : i32
    %c0_i32_1 = arith.constant 0 : i32
    return %c0_i32, %c0_i32_0 : i32, i32
  }
  func.func @transform_7(%arg0: i32) -> (i32, i32) {
    %c0_i32 = arith.constant 0 : i32
    %c0_i32_0 = arith.constant 0 : i32
    %c0_i32_1 = arith.constant 0 : i32
    return %c0_i32, %c0_i32_0 : i32, i32
  }
  func.func @transform_8(%arg0: i32) -> (i32, i32) {
    %c0_i32 = arith.constant 0 : i32
    %c0_i32_0 = arith.constant 0 : i32
    %c0_i32_1 = arith.constant 0 : i32
    return %c0_i32, %c0_i32_0 : i32, i32
  }
  func.func @transform_9(%arg0: i32) -> (i32, i32) {
    %c0_i32 = arith.constant 0 : i32
    %c0_i32_0 = arith.constant 0 : i32
    return %arg0, %c0_i32 : i32, i32
  }
}

</mosaic_0001>

<llo_original>
// kernel: tpu_custom_call.1
$region0: #{tpu_custom_call.1}
  #allocation0 [shape = 'u32[]', space=smem, size = 0x4, offset = 0x4, fixed_abs, tag = 'smem constant byte address 0x4 - core index']
  #allocation1 [shape = 'u32[144,128]{1,0:T(1,128)}', space=vmem, size = 0x12000, scoped, tag = 'internal scratch']
  %s0 = inlined_call_operand.hbm [shape: bf16[16,128], index: 0, kind: input, shape index: {}]
  %s1 = inlined_call_operand.hbm [shape: bf16[128,1024], index: 1, kind: input, shape index: {}]
  %s2 = inlined_call_operand.hbm [shape: f32[1,1024], index: 2, kind: input, shape index: {}]
  %s3 = inlined_call_operand.hbm [shape: bf16[64,256], index: 3, kind: input, shape index: {}]
  %s4 = inlined_call_operand.hbm [shape: bf16[256,1024], index: 4, kind: input, shape index: {}]
  %s5 = inlined_call_operand.vmem [shape: f32[1,1024], index: 5, kind: input, shape index: {}]
  %s6 = inlined_call_operand.hbm [shape: bf16[64,256], index: 6, kind: input, shape index: {}]
  %s7 = inlined_call_operand.hbm [shape: bf16[64,128], index: 7, kind: input, shape index: {}]
  %s8 = inlined_call_operand.vmem [shape: f32[1,128], index: 8, kind: input, shape index: {}]
  %s9 = inlined_call_operand.hbm [shape: bf16[16,128], index: 9, kind: output, shape index: {}]
  %s10 = sld [smem:[#allocation0]]
  $region74: #{tpu_custom_call.1} parent=0
    _
  %s12 = ssub.s32 1, %s10
  %s13 = scalar_select 0, %s12, %s10
  $region1: #{tpu_custom_call.1} parent=0
    #allocation2 [shape = 'u8[4096]{0}', space=vmem, size = 0x1000, scoped, tag = 'input window, operand 0, single buffered']
    #allocation3 [shape = 's32[1]{0}', space=sflag, size = 0x4, scoped, tag = 'scoped memory for tpu_custom_call.1']
    #allocation4 [shape = 's32[1]{0}', space=sflag, size = 0x4, scoped, tag = 'scoped memory for tpu_custom_call.1']
    #allocation5 [shape = 'u8[262144]{0}', space=vmem, size = 0x40000, scoped, tag = 'input window, operand 1, single buffered']
    #allocation6 [shape = 's32[1]{0}', space=sflag, size = 0x4, scoped, tag = 'scoped memory for tpu_custom_call.1']
    #allocation7 [shape = 'u8[4096]{0}', space=vmem, size = 0x1000, scoped, tag = 'input window, operand 2, single buffered']
    #allocation8 [shape = 'u8[32768]{0}', space=vmem, size = 0x8000, scoped, tag = 'input window, operand 3, single buffered']
    #allocation9 [shape = 's32[1]{0}', space=sflag, size = 0x4, scoped, tag = 'scoped memory for tpu_custom_call.1']
    #allocation10 [shape = 'u8[524288]{0}', space=vmem, size = 0x80000, scoped, tag = 'input window, operand 4, single buffered']
    #allocation11 [shape = 'u8[32768]{0}', space=vmem, size = 0x8000, scoped, tag = 'input window, operand 6, single buffered']
    #allocation12 [shape = 's32[1]{0}', space=sflag, size = 0x4, scoped, tag = 'scoped memory for tpu_custom_call.1']
    #allocation13 [shape = 'u8[16384]{0}', space=vmem, size = 0x4000, scoped, tag = 'input window, operand 7, single buffered']
    #allocation14 [shape = 'u8[4096]{0}', space=vmem, size = 0x1000, scoped, tag = 'output window, operand 0, single buffered']
    %14 = vsyncpa [#allocation3], 0
    %15 = vsyncpa [#allocation6], 0
    %16 = vsyncpa [#allocation9], 0
    %17 = vsyncpa [#allocation12], 0
    %18 = vsyncpa [#allocation4], 0
    // Predicated region
    $region2: #{tpu_custom_call.1} parent=1 // pred_check
      _
    $region3: #{tpu_custom_call.1} parent=1 // pred_check_branch
      %20 = sbr.rel (0) target = $region5
    $region4: #{tpu_custom_call.1} parent=1 // pred_region
      %s22 = ssub.s32 128, 128
      %23 = vsyncadd [#allocation3], %s22
      %s24 = sshll.u32 [#allocation2], 4
      %s25 = int_to_ptr.vmem [resolvable:$true] %s24
      %30 = dma.hbm_to_vmem [thread:$0]  %s0, 128, %s25, [#allocation3], 64, 64, 4
    $region5: #{tpu_custom_call.1} parent=1 // pred_fallthru
      _
    // Predicated region
    $region6: #{tpu_custom_call.1} parent=1 // pred_check
      _
    $region7: #{tpu_custom_call.1} parent=1 // pred_check_branch
      %32 = sbr.rel (0) target = $region9
    $region8: #{tpu_custom_call.1} parent=1 // pred_region
      %s34 = ssub.s32 8192, 8192
      %35 = vsyncadd [#allocation6], %s34
      %s36 = sshll.u32 [#allocation5], 4
      %s37 = int_to_ptr.vmem [resolvable:$true] %s36
      %42 = dma.hbm_to_vmem [thread:$0]  %s1, 8192, %s37, [#allocation6], 512, 512, 32
    $region9: #{tpu_custom_call.1} parent=1 // pred_fallthru
      _
    // Predicated region
    $region10: #{tpu_custom_call.1} parent=1 // pred_check
      _
    $region11: #{tpu_custom_call.1} parent=1 // pred_check_branch
      %44 = sbr.rel (0) target = $region13
    $region12: #{tpu_custom_call.1} parent=1 // pred_region
      %s46 = ssub.s32 128, 128
      %47 = vsyncadd [#allocation6], %s46
      %s49 = sshll.u32 [#allocation7], 4
      %s50 = int_to_ptr.vmem [resolvable:$true] %s49
      %52 = dma.hbm_to_vmem [thread:$0]  %s2, 128, %s50, [#allocation6]
    $region13: #{tpu_custom_call.1} parent=1 // pred_fallthru
      _
    // Predicated region
    $region14: #{tpu_custom_call.1} parent=1 // pred_check
      _
    $region15: #{tpu_custom_call.1} parent=1 // pred_check_branch
      %54 = sbr.rel (0) target = $region17
    $region16: #{tpu_custom_call.1} parent=1 // pred_region
      %s56 = ssub.s32 1024, 1024
      %57 = vsyncadd [#allocation9], %s56
      %s58 = sshll.u32 [#allocation8], 4
      %s59 = int_to_ptr.vmem [resolvable:$true] %s58
      %64 = dma.hbm_to_vmem [thread:$0]  %s3, 1024, %s59, [#allocation9], 128, 128, 8
    $region17: #{tpu_custom_call.1} parent=1 // pred_fallthru
      _
    // Predicated region
    $region18: #{tpu_custom_call.1} parent=1 // pred_check
      _
    $region19: #{tpu_custom_call.1} parent=1 // pred_check_branch
      %66 = sbr.rel (0) target = $region21
    $region20: #{tpu_custom_call.1} parent=1 // pred_region
      %s68 = ssub.s32 16384, 16384
      %69 = vsyncadd [#allocation9], %s68
      %s70 = sshll.u32 [#allocation10], 4
      %s71 = int_to_ptr.vmem [resolvable:$true] %s70
      %76 = dma.hbm_to_vmem [thread:$0]  %s4, 16384, %s71, [#allocation9], 512, 512, 32
    $region21: #{tpu_custom_call.1} parent=1 // pred_fallthru
      _
    // Predicated region
    $region22: #{tpu_custom_call.1} parent=1 // pred_check
      _
    $region23: #{tpu_custom_call.1} parent=1 // pred_check_branch
      %78 = sbr.rel (0) target = $region25
    $region24: #{tpu_custom_call.1} parent=1 // pred_region
      _
    $region25: #{tpu_custom_call.1} parent=1 // pred_fallthru
      _
    // Predicated region
    $region26: #{tpu_custom_call.1} parent=1 // pred_check
      _
    $region27: #{tpu_custom_call.1} parent=1 // pred_check_branch
      %80 = sbr.rel (0) target = $region29
    $region28: #{tpu_custom_call.1} parent=1 // pred_region
      %s82 = ssub.s32 1024, 1024
      %83 = vsyncadd [#allocation12], %s82
      %s84 = sshll.u32 [#allocation11], 4
      %s85 = int_to_ptr.vmem [resolvable:$true] %s84
      %90 = dma.hbm_to_vmem [thread:$0]  %s6, 1024, %s85, [#allocation12], 128, 128, 8
    $region29: #{tpu_custom_call.1} parent=1 // pred_fallthru
      _
    // Predicated region
    $region30: #{tpu_custom_call.1} parent=1 // pred_check
      _
    $region31: #{tpu_custom_call.1} parent=1 // pred_check_branch
      %92 = sbr.rel (0) target = $region33
    $region32: #{tpu_custom_call.1} parent=1 // pred_region
      %s94 = ssub.s32 512, 512
      %95 = vsyncadd [#allocation12], %s94
      %s96 = sshll.u32 [#allocation13], 4
      %s97 = int_to_ptr.vmem [resolvable:$true] %s96
      %102 = dma.hbm_to_vmem [thread:$0]  %s7, 512, %s97, [#allocation12], 64, 64, 4
    $region33: #{tpu_custom_call.1} parent=1 // pred_fallthru
      _
    // Predicated region
    $region34: #{tpu_custom_call.1} parent=1 // pred_check
      _
    $region35: #{tpu_custom_call.1} parent=1 // pred_check_branch
      %104 = sbr.rel (0) target = $region37
    $region36: #{tpu_custom_call.1} parent=1 // pred_region
      _
    $region37: #{tpu_custom_call.1} parent=1 // pred_fallthru
      _
    // Predicated region
    $region38: #{tpu_custom_call.1} parent=1 // pred_check
      _
    $region39: #{tpu_custom_call.1} parent=1 // pred_check_branch
      %106 = sbr.rel (0) target = $region41
    $region40: #{tpu_custom_call.1} parent=1 // pred_region
      %107 = dma.done [#allocation3], 128
    $region41: #{tpu_custom_call.1} parent=1 // pred_fallthru
      _
    // Predicated region
    $region42: #{tpu_custom_call.1} parent=1 // pred_check
      _
    $region43: #{tpu_custom_call.1} parent=1 // pred_check_branch
      %109 = sbr.rel (0) target = $region45
    $region44: #{tpu_custom_call.1} parent=1 // pred_region
      %110 = dma.done [#allocation6], 8192
    $region45: #{tpu_custom_call.1} parent=1 // pred_fallthru
      _
    // Predicated region
    $region46: #{tpu_custom_call.1} parent=1 // pred_check
      _
    $region47: #{tpu_custom_call.1} parent=1 // pred_check_branch
      %112 = sbr.rel (0) target = $region49
    $region48: #{tpu_custom_call.1} parent=1 // pred_region
      %113 = dma.done [#allocation6], 128
    $region49: #{tpu_custom_call.1} parent=1 // pred_fallthru
      _
    // Predicated region
    $region50: #{tpu_custom_call.1} parent=1 // pred_check
      _
    $region51: #{tpu_custom_call.1} parent=1 // pred_check_branch
      %115 = sbr.rel (0) target = $region53
    $region52: #{tpu_custom_call.1} parent=1 // pred_region
      %116 = dma.done [#allocation9], 1024
    $region53: #{tpu_custom_call.1} parent=1 // pred_fallthru
      _
    // Predicated region
    $region54: #{tpu_custom_call.1} parent=1 // pred_check
      _
    $region55: #{tpu_custom_call.1} parent=1 // pred_check_branch
      %118 = sbr.rel (0) target = $region57
    $region56: #{tpu_custom_call.1} parent=1 // pred_region
      %119 = dma.done [#allocation9], 16384
    $region57: #{tpu_custom_call.1} parent=1 // pred_fallthru
      _
    // Predicated region
    $region58: #{tpu_custom_call.1} parent=1 // pred_check
      _
    $region59: #{tpu_custom_call.1} parent=1 // pred_check_branch
      %121 = sbr.rel (0) target = $region61
    $region60: #{tpu_custom_call.1} parent=1 // pred_region
      %122 = dma.done [#allocation12], 1024
    $region61: #{tpu_custom_call.1} parent=1 // pred_fallthru
      _
    // Predicated region
    $region62: #{tpu_custom_call.1} parent=1 // pred_check
      _
    $region63: #{tpu_custom_call.1} parent=1 // pred_check_branch
      %124 = sbr.rel (0) target = $region65
    $region64: #{tpu_custom_call.1} parent=1 // pred_region
      %125 = dma.done [#allocation12], 512
    $region65: #{tpu_custom_call.1} parent=1 // pred_fallthru
      _
    %v127 = vld [vmem:[#allocation2] sm:$0xf]
    %v128 = vld [vmem:[#allocation2 + $0x4] sm:$0xf]
    %v129 = vld [vmem:[#allocation5] sm:$0xff]
    %v130 = vld [vmem:[#allocation5 + $0x8] sm:$0xff]
    %v131 = vld [vmem:[#allocation5 + $0x10] sm:$0xff]
    %v132 = vld [vmem:[#allocation5 + $0x18] sm:$0xff]
    %v133 = vld [vmem:[#allocation5 + $0x20] sm:$0xff]
    %v134 = vld [vmem:[#allocation5 + $0x28] sm:$0xff]
    %v135 = vld [vmem:[#allocation5 + $0x30] sm:$0xff]
    %v136 = vld [vmem:[#allocation5 + $0x38] sm:$0xff]
    %v137 = vld [vmem:[#allocation5 + $0x40] sm:$0xff]
    %v138 = vld [vmem:[#allocation5 + $0x48] sm:$0xff]
    %v139 = vld [vmem:[#allocation5 + $0x50] sm:$0xff]
    %v140 = vld [vmem:[#allocation5 + $0x58] sm:$0xff]
    %v141 = vld [vmem:[#allocation5 + $0x60] sm:$0xff]
    %v142 = vld [vmem:[#allocation5 + $0x68] sm:$0xff]
    %v143 = vld [vmem:[#allocation5 + $0x70] sm:$0xff]
    %v144 = vld [vmem:[#allocation5 + $0x78] sm:$0xff]
    %v145 = vld [vmem:[#allocation5 + $0x80] sm:$0xff]
    %v146 = vld [vmem:[#allocation5 + $0x88] sm:$0xff]
    %v147 = vld [vmem:[#allocation5 + $0x90] sm:$0xff]
    %v148 = vld [vmem:[#allocation5 + $0x98] sm:$0xff]
    %v149 = vld [vmem:[#allocation5 + $0xa0] sm:$0xff]
    %v150 = vld [vmem:[#allocation5 + $0xa8] sm:$0xff]
    %v151 = vld [vmem:[#allocation5 + $0xb0] sm:$0xff]
    %v152 = vld [vmem:[#allocation5 + $0xb8] sm:$0xff]
    %v153 = vld [vmem:[#allocation5 + $0xc0] sm:$0xff]
    %v154 = vld [vmem:[#allocation5 + $0xc8] sm:$0xff]
    %v155 = vld [vmem:[#allocation5 + $0xd0] sm:$0xff]
    %v156 = vld [vmem:[#allocation5 + $0xd8] sm:$0xff]
    %v157 = vld [vmem:[#allocation5 + $0xe0] sm:$0xff]
    %v158 = vld [vmem:[#allocation5 + $0xe8] sm:$0xff]
    %v159 = vld [vmem:[#allocation5 + $0xf0] sm:$0xff]
    %v160 = vld [vmem:[#allocation5 + $0xf8] sm:$0xff]
    %v161 = vld [vmem:[#allocation5 + $0x100] sm:$0xff]
    %v162 = vld [vmem:[#allocation5 + $0x108] sm:$0xff]
    %v163 = vld [vmem:[#allocation5 + $0x110] sm:$0xff]
    %v164 = vld [vmem:[#allocation5 + $0x118] sm:$0xff]
    %v165 = vld [vmem:[#allocation5 + $0x120] sm:$0xff]
    %v166 = vld [vmem:[#allocation5 + $0x128] sm:$0xff]
    %v167 = vld [vmem:[#allocation5 + $0x130] sm:$0xff]
    %v168 = vld [vmem:[#allocation5 + $0x138] sm:$0xff]
    %v169 = vld [vmem:[#allocation5 + $0x140] sm:$0xff]
    %v170 = vld [vmem:[#allocation5 + $0x148] sm:$0xff]
    %v171 = vld [vmem:[#allocation5 + $0x150] sm:$0xff]
    %v172 = vld [vmem:[#allocation5 + $0x158] sm:$0xff]
    %v173 = vld [vmem:[#allocation5 + $0x160] sm:$0xff]
    %v174 = vld [vmem:[#allocation5 + $0x168] sm:$0xff]
    %v175 = vld [vmem:[#allocation5 + $0x170] sm:$0xff]
    %v176 = vld [vmem:[#allocation5 + $0x178] sm:$0xff]
    %v177 = vld [vmem:[#allocation5 + $0x180] sm:$0xff]
    %v178 = vld [vmem:[#allocation5 + $0x188] sm:$0xff]
    %v179 = vld [vmem:[#allocation5 + $0x190] sm:$0xff]
    %v180 = vld [vmem:[#allocation5 + $0x198] sm:$0xff]
    %v181 = vld [vmem:[#allocation5 + $0x1a0] sm:$0xff]
    %v182 = vld [vmem:[#allocation5 + $0x1a8] sm:$0xff]
    %v183 = vld [vmem:[#allocation5 + $0x1b0] sm:$0xff]
    %v184 = vld [vmem:[#allocation5 + $0x1b8] sm:$0xff]
    %v185 = vld [vmem:[#allocation5 + $0x1c0] sm:$0xff]
    %v186 = vld [vmem:[#allocation5 + $0x1c8] sm:$0xff]
    %v187 = vld [vmem:[#allocation5 + $0x1d0] sm:$0xff]
    %v188 = vld [vmem:[#allocation5 + $0x1d8] sm:$0xff]
    %v189 = vld [vmem:[#allocation5 + $0x1e0] sm:$0xff]
    %v190 = vld [vmem:[#allocation5 + $0x1e8] sm:$0xff]
    %v191 = vld [vmem:[#allocation5 + $0x1f0] sm:$0xff]
    %v192 = vld [vmem:[#allocation5 + $0x1f8] sm:$0xff]
    %v193 = vld [vmem:[#allocation7] sm:$0xff]
    %v194 = vld [vmem:[#allocation8] sm:$0xff]
    %v195 = vld [vmem:[#allocation8 + $0x8] sm:$0xff]
    %v196 = vld [vmem:[#allocation8 + $0x10] sm:$0xff]
    %v197 = vld [vmem:[#allocation8 + $0x18] sm:$0xff]
    %v198 = vld [vmem:[#allocation8 + $0x20] sm:$0xff]
    %v199 = vld [vmem:[#allocation8 + $0x28] sm:$0xff]
    %v200 = vld [vmem:[#allocation8 + $0x30] sm:$0xff]
    %v201 = vld [vmem:[#allocation8 + $0x38] sm:$0xff]
    %v202 = vld [vmem:[#allocation10] sm:$0xff]
    %v203 = vld [vmem:[#allocation10 + $0x8] sm:$0xff]
    %v204 = vld [vmem:[#allocation10 + $0x10] sm:$0xff]
    %v205 = vld [vmem:[#allocation10 + $0x18] sm:$0xff]
    %v206 = vld [vmem:[#allocation10 + $0x20] sm:$0xff]
    %v207 = vld [vmem:[#allocation10 + $0x28] sm:$0xff]
    %v208 = vld [vmem:[#allocation10 + $0x30] sm:$0xff]
    %v209 = vld [vmem:[#allocation10 + $0x38] sm:$0xff]
    %v210 = vld [vmem:[#allocation10 + $0x40] sm:$0xff]
    %v211 = vld [vmem:[#allocation10 + $0x48] sm:$0xff]
    %v212 = vld [vmem:[#allocation10 + $0x50] sm:$0xff]
    %v213 = vld [vmem:[#allocation10 + $0x58] sm:$0xff]
    %v214 = vld [vmem:[#allocation10 + $0x60] sm:$0xff]
    %v215 = vld [vmem:[#allocation10 + $0x68] sm:$0xff]
    %v216 = vld [vmem:[#allocation10 + $0x70] sm:$0xff]
    %v217 = vld [vmem:[#allocation10 + $0x78] sm:$0xff]
    %v218 = vld [vmem:[#allocation10 + $0x80] sm:$0xff]
    %v219 = vld [vmem:[#allocation10 + $0x88] sm:$0xff]
    %v220 = vld [vmem:[#allocation10 + $0x90] sm:$0xff]
    %v221 = vld [vmem:[#allocation10 + $0x98] sm:$0xff]
    %v222 = vld [vmem:[#allocation10 + $0xa0] sm:$0xff]
    %v223 = vld [vmem:[#allocation10 + $0xa8] sm:$0xff]
    %v224 = vld [vmem:[#allocation10 + $0xb0] sm:$0xff]
    %v225 = vld [vmem:[#allocation10 + $0xb8] sm:$0xff]
    %v226 = vld [vmem:[#allocation10 + $0xc0] sm:$0xff]
    %v227 = vld [vmem:[#allocation10 + $0xc8] sm:$0xff]
    %v228 = vld [vmem:[#allocation10 + $0xd0] sm:$0xff]
    %v229 = vld [vmem:[#allocation10 + $0xd8] sm:$0xff]
    %v230 = vld [vmem:[#allocation10 + $0xe0] sm:$0xff]
    %v231 = vld [vmem:[#allocation10 + $0xe8] sm:$0xff]
    %v232 = vld [vmem:[#allocation10 + $0xf0] sm:$0xff]
    %v233 = vld [vmem:[#allocation10 + $0xf8] sm:$0xff]
    %v234 = vld [vmem:[#allocation10 + $0x100] sm:$0xff]
    %v235 = vld [vmem:[#allocation10 + $0x108] sm:$0xff]
    %v236 = vld [vmem:[#allocation10 + $0x110] sm:$0xff]
    %v237 = vld [vmem:[#allocation10 + $0x118] sm:$0xff]
    %v238 = vld [vmem:[#allocation10 + $0x120] sm:$0xff]
    %v239 = vld [vmem:[#allocation10 + $0x128] sm:$0xff]
    %v240 = vld [vmem:[#allocation10 + $0x130] sm:$0xff]
    %v241 = vld [vmem:[#allocation10 + $0x138] sm:$0xff]
    %v242 = vld [vmem:[#allocation10 + $0x140] sm:$0xff]
    %v243 = vld [vmem:[#allocation10 + $0x148] sm:$0xff]
    %v244 = vld [vmem:[#allocation10 + $0x150] sm:$0xff]
    %v245 = vld [vmem:[#allocation10 + $0x158] sm:$0xff]
    %v246 = vld [vmem:[#allocation10 + $0x160] sm:$0xff]
    %v247 = vld [vmem:[#allocation10 + $0x168] sm:$0xff]
    %v248 = vld [vmem:[#allocation10 + $0x170] sm:$0xff]
    %v249 = vld [vmem:[#allocation10 + $0x178] sm:$0xff]
    %v250 = vld [vmem:[#allocation10 + $0x180] sm:$0xff]
    %v251 = vld [vmem:[#allocation10 + $0x188] sm:$0xff]
    %v252 = vld [vmem:[#allocation10 + $0x190] sm:$0xff]
    %v253 = vld [vmem:[#allocation10 + $0x198] sm:$0xff]
    %v254 = vld [vmem:[#allocation10 + $0x1a0] sm:$0xff]
    %v255 = vld [vmem:[#allocation10 + $0x1a8] sm:$0xff]
    %v256 = vld [vmem:[#allocation10 + $0x1b0] sm:$0xff]
    %v257 = vld [vmem:[#allocation10 + $0x1b8] sm:$0xff]
    %v258 = vld [vmem:[#allocation10 + $0x1c0] sm:$0xff]
    %v259 = vld [vmem:[#allocation10 + $0x1c8] sm:$0xff]
    %v260 = vld [vmem:[#allocation10 + $0x1d0] sm:$0xff]
    %v261 = vld [vmem:[#allocation10 + $0x1d8] sm:$0xff]
    %v262 = vld [vmem:[#allocation10 + $0x1e0] sm:$0xff]
    %v263 = vld [vmem:[#allocation10 + $0x1e8] sm:$0xff]
    %v264 = vld [vmem:[#allocation10 + $0x1f0] sm:$0xff]
    %v265 = vld [vmem:[#allocation10 + $0x1f8] sm:$0xff]
    %v266 = vld [vmem:[#allocation10 + $0x200] sm:$0xff]
    %v267 = vld [vmem:[#allocation10 + $0x208] sm:$0xff]
    %v268 = vld [vmem:[#allocation10 + $0x210] sm:$0xff]
    %v269 = vld [vmem:[#allocation10 + $0x218] sm:$0xff]
    %v270 = vld [vmem:[#allocation10 + $0x220] sm:$0xff]
    %v271 = vld [vmem:[#allocation10 + $0x228] sm:$0xff]
    %v272 = vld [vmem:[#allocation10 + $0x230] sm:$0xff]
    %v273 = vld [vmem:[#allocation10 + $0x238] sm:$0xff]
    %v274 = vld [vmem:[#allocation10 + $0x240] sm:$0xff]
    %v275 = vld [vmem:[#allocation10 + $0x248] sm:$0xff]
    %v276 = vld [vmem:[#allocation10 + $0x250] sm:$0xff]
    %v277 = vld [vmem:[#allocation10 + $0x258] sm:$0xff]
    %v278 = vld [vmem:[#allocation10 + $0x260] sm:$0xff]
    %v279 = vld [vmem:[#allocation10 + $0x268] sm:$0xff]
    %v280 = vld [vmem:[#allocation10 + $0x270] sm:$0xff]
    %v281 = vld [vmem:[#allocation10 + $0x278] sm:$0xff]
    %v282 = vld [vmem:[#allocation10 + $0x280] sm:$0xff]
    %v283 = vld [vmem:[#allocation10 + $0x288] sm:$0xff]
    %v284 = vld [vmem:[#allocation10 + $0x290] sm:$0xff]
    %v285 = vld [vmem:[#allocation10 + $0x298] sm:$0xff]
    %v286 = vld [vmem:[#allocation10 + $0x2a0] sm:$0xff]
    %v287 = vld [vmem:[#allocation10 + $0x2a8] sm:$0xff]
    %v288 = vld [vmem:[#allocation10 + $0x2b0] sm:$0xff]
    %v289 = vld [vmem:[#allocation10 + $0x2b8] sm:$0xff]
    %v290 = vld [vmem:[#allocation10 + $0x2c0] sm:$0xff]
    %v291 = vld [vmem:[#allocation10 + $0x2c8] sm:$0xff]
    %v292 = vld [vmem:[#allocation10 + $0x2d0] sm:$0xff]
    %v293 = vld [vmem:[#allocation10 + $0x2d8] sm:$0xff]
    %v294 = vld [vmem:[#allocation10 + $0x2e0] sm:$0xff]
    %v295 = vld [vmem:[#allocation10 + $0x2e8] sm:$0xff]
    %v296 = vld [vmem:[#allocation10 + $0x2f0] sm:$0xff]
    %v297 = vld [vmem:[#allocation10 + $0x2f8] sm:$0xff]
    %v298 = vld [vmem:[#allocation10 + $0x300] sm:$0xff]
    %v299 = vld [vmem:[#allocation10 + $0x308] sm:$0xff]
    %v300 = vld [vmem:[#allocation10 + $0x310] sm:$0xff]
    %v301 = vld [vmem:[#allocation10 + $0x318] sm:$0xff]
    %v302 = vld [vmem:[#allocation10 + $0x320] sm:$0xff]
    %v303 = vld [vmem:[#allocation10 + $0x328] sm:$0xff]
    %v304 = vld [vmem:[#allocation10 + $0x330] sm:$0xff]
    %v305 = vld [vmem:[#allocation10 + $0x338] sm:$0xff]
    %v306 = vld [vmem:[#allocation10 + $0x340] sm:$0xff]
    %v307 = vld [vmem:[#allocation10 + $0x348] sm:$0xff]
    %v308 = vld [vmem:[#allocation10 + $0x350] sm:$0xff]
    %v309 = vld [vmem:[#allocation10 + $0x358] sm:$0xff]
    %v310 = vld [vmem:[#allocation10 + $0x360] sm:$0xff]
    %v311 = vld [vmem:[#allocation10 + $0x368] sm:$0xff]
    %v312 = vld [vmem:[#allocation10 + $0x370] sm:$0xff]
    %v313 = vld [vmem:[#allocation10 + $0x378] sm:$0xff]
    %v314 = vld [vmem:[#allocation10 + $0x380] sm:$0xff]
    %v315 = vld [vmem:[#allocation10 + $0x388] sm:$0xff]
    %v316 = vld [vmem:[#allocation10 + $0x390] sm:$0xff]
    %v317 = vld [vmem:[#allocation10 + $0x398] sm:$0xff]
    %v318 = vld [vmem:[#allocation10 + $0x3a0] sm:$0xff]
    %v319 = vld [vmem:[#allocation10 + $0x3a8] sm:$0xff]
    %v320 = vld [vmem:[#allocation10 + $0x3b0] sm:$0xff]
    %v321 = vld [vmem:[#allocation10 + $0x3b8] sm:$0xff]
    %v322 = vld [vmem:[#allocation10 + $0x3c0] sm:$0xff]
    %v323 = vld [vmem:[#allocation10 + $0x3c8] sm:$0xff]
    %v324 = vld [vmem:[#allocation10 + $0x3d0] sm:$0xff]
    %v325 = vld [vmem:[#allocation10 + $0x3d8] sm:$0xff]
    %v326 = vld [vmem:[#allocation10 + $0x3e0] sm:$0xff]
    %v327 = vld [vmem:[#allocation10 + $0x3e8] sm:$0xff]
    %v328 = vld [vmem:[#allocation10 + $0x3f0] sm:$0xff]
    %v329 = vld [vmem:[#allocation10 + $0x3f8] sm:$0xff]
    %v330 = vld [vmem:[%s5] sm:$0xff]
    %v331 = vld [vmem:[#allocation11] sm:$0xff]
    %v332 = vld [vmem:[#allocation11 + $0x8] sm:$0xff]
    %v333 = vld [vmem:[#allocation11 + $0x10] sm:$0xff]
    %v334 = vld [vmem:[#allocation11 + $0x18] sm:$0xff]
    %v335 = vld [vmem:[#allocation11 + $0x20] sm:$0xff]
    %v336 = vld [vmem:[#allocation11 + $0x28] sm:$0xff]
    %v337 = vld [vmem:[#allocation11 + $0x30] sm:$0xff]
    %v338 = vld [vmem:[#allocation11 + $0x38] sm:$0xff]
    %v339 = vld [vmem:[#allocation13] sm:$0xf]
    %v340 = vld [vmem:[#allocation13 + $0x4] sm:$0xf]
    %v341 = vld [vmem:[#allocation13 + $0x8] sm:$0xf]
    %v342 = vld [vmem:[#allocation13 + $0xc] sm:$0xf]
    %v343 = vld [vmem:[#allocation13 + $0x10] sm:$0xf]
    %v344 = vld [vmem:[#allocation13 + $0x14] sm:$0xf]
    %v345 = vld [vmem:[#allocation13 + $0x18] sm:$0xf]
    %v346 = vld [vmem:[#allocation13 + $0x1c] sm:$0xf]
    %v347 = vld [vmem:[%s8] sm:$0x1]
    %v348 = vlaneseq
    %v349 = vand.u32 %v348, 127
    %v350 = vadd.s32 %v349, 128
    %vm351 = vcmp.ge.s32.totalorder %v349, 128
    %vm352 = vcmp.ge.s32.totalorder %v350, 128
    %vm353 = vcmp.lt.s32.totalorder %v349, 192
    %vm354 = vcmp.lt.s32.totalorder %v350, 192
    %vm355 = vmand %vm351, %vm353
    %vm356 = vmand %vm352, %vm354
    %v357 = vsel %vm355, 2.0, 1.0
    %v358 = vsel %vm356, 2.0, 1.0
    %v359 = vsel %vm355, -1.0, 0.0
    %v360 = vsel %vm356, -1.0, 0.0
    %v362 = vlaneseq
    %v363 = vshrl.u32 %v362, 7
    %v364 = vsub.s32 0, %v363
    %v365 = vrot.slane %v193, %v364
    %v366 = vlaneseq
    %v367 = vshrl.u32 %v366, 7
    %v368 = vsub.s32 1, %v367
    %v369 = vrot.slane %v193, %v368
    %v370 = vlaneseq
    %v371 = vshrl.u32 %v370, 7
    %v372 = vsub.s32 2, %v371
    %v373 = vrot.slane %v193, %v372
    %v374 = vlaneseq
    %v375 = vshrl.u32 %v374, 7
    %v376 = vsub.s32 3, %v375
    %v377 = vrot.slane %v193, %v376
    %v378 = vlaneseq
    %v379 = vshrl.u32 %v378, 7
    %v380 = vsub.s32 4, %v379
    %v381 = vrot.slane %v193, %v380
    %v382 = vlaneseq
    %v383 = vshrl.u32 %v382, 7
    %v384 = vsub.s32 5, %v383
    %v385 = vrot.slane %v193, %v384
    %v386 = vlaneseq
    %v387 = vshrl.u32 %v386, 7
    %v388 = vsub.s32 6, %v387
    %v389 = vrot.slane %v193, %v388
    %v390 = vlaneseq
    %v391 = vshrl.u32 %v390, 7
    %v392 = vsub.s32 7, %v391
    %v393 = vrot.slane %v193, %v392
    %v404 = vunpack.c.l.b16 %v127
    %v405 = vunpack.c.l.b16 %v128
    %v406 = vpack.c.b16 %v405, %v404
    %v472 = vunpack.c.l.b16 %v129
    %v473 = vunpack.c.h.b16 %v129
    %v474 = vunpack.c.l.b16 %v130
    %v475 = vunpack.c.h.b16 %v130
    %v476 = vunpack.c.l.b16 %v131
    %v477 = vunpack.c.h.b16 %v131
    %v478 = vunpack.c.l.b16 %v132
    %v479 = vunpack.c.h.b16 %v132
    %v480 = vunpack.c.l.b16 %v133
    %v481 = vunpack.c.h.b16 %v133
    %v482 = vunpack.c.l.b16 %v134
    %v483 = vunpack.c.h.b16 %v134
    %v484 = vunpack.c.l.b16 %v135
    %v485 = vunpack.c.h.b16 %v135
    %v486 = vunpack.c.l.b16 %v136
    %v487 = vunpack.c.h.b16 %v136
    %v488 = vunpack.c.l.b16 %v137
    %v489 = vunpack.c.h.b16 %v137
    %v490 = vunpack.c.l.b16 %v138
    %v491 = vunpack.c.h.b16 %v138
    %v492 = vunpack.c.l.b16 %v139
    %v493 = vunpack.c.h.b16 %v139
    %v494 = vunpack.c.l.b16 %v140
    %v495 = vunpack.c.h.b16 %v140
    %v496 = vunpack.c.l.b16 %v141
    %v497 = vunpack.c.h.b16 %v141
    %v498 = vunpack.c.l.b16 %v142
    %v499 = vunpack.c.h.b16 %v142
    %v500 = vunpack.c.l.b16 %v143
    %v501 = vunpack.c.h.b16 %v143
    %v502 = vunpack.c.l.b16 %v144
    %v503 = vunpack.c.h.b16 %v144
    %v504 = vunpack.c.l.b16 %v145
    %v505 = vunpack.c.h.b16 %v145
    %v506 = vunpack.c.l.b16 %v146
    %v507 = vunpack.c.h.b16 %v146
    %v508 = vunpack.c.l.b16 %v147
    %v509 = vunpack.c.h.b16 %v147
    %v510 = vunpack.c.l.b16 %v148
    %v511 = vunpack.c.h.b16 %v148
    %v512 = vunpack.c.l.b16 %v149
    %v513 = vunpack.c.h.b16 %v149
    %v514 = vunpack.c.l.b16 %v150
    %v515 = vunpack.c.h.b16 %v150
    %v516 = vunpack.c.l.b16 %v151
    %v517 = vunpack.c.h.b16 %v151
    %v518 = vunpack.c.l.b16 %v152
    %v519 = vunpack.c.h.b16 %v152
    %v520 = vunpack.c.l.b16 %v153
    %v521 = vunpack.c.h.b16 %v153
    %v522 = vunpack.c.l.b16 %v154
    %v523 = vunpack.c.h.b16 %v154
    %v524 = vunpack.c.l.b16 %v155
    %v525 = vunpack.c.h.b16 %v155
    %v526 = vunpack.c.l.b16 %v156
    %v527 = vunpack.c.h.b16 %v156
    %v528 = vunpack.c.l.b16 %v157
    %v529 = vunpack.c.h.b16 %v157
    %v530 = vunpack.c.l.b16 %v158
    %v531 = vunpack.c.h.b16 %v158
    %v532 = vunpack.c.l.b16 %v159
    %v533 = vunpack.c.h.b16 %v159
    %v534 = vunpack.c.l.b16 %v160
    %v535 = vunpack.c.h.b16 %v160
    %v536 = vunpack.c.l.b16 %v161
    %v537 = vunpack.c.h.b16 %v161
    %v538 = vunpack.c.l.b16 %v162
    %v539 = vunpack.c.h.b16 %v162
    %v540 = vunpack.c.l.b16 %v163
    %v541 = vunpack.c.h.b16 %v163
    %v542 = vunpack.c.l.b16 %v164
    %v543 = vunpack.c.h.b16 %v164
    %v544 = vunpack.c.l.b16 %v165
    %v545 = vunpack.c.h.b16 %v165
    %v546 = vunpack.c.l.b16 %v166
    %v547 = vunpack.c.h.b16 %v166
    %v548 = vunpack.c.l.b16 %v167
    %v549 = vunpack.c.h.b16 %v167
    %v550 = vunpack.c.l.b16 %v168
    %v551 = vunpack.c.h.b16 %v168
    %v552 = vunpack.c.l.b16 %v169
    %v553 = vunpack.c.h.b16 %v169
    %v554 = vunpack.c.l.b16 %v170
    %v555 = vunpack.c.h.b16 %v170
    %v556 = vunpack.c.l.b16 %v171
    %v557 = vunpack.c.h.b16 %v171
    %v558 = vunpack.c.l.b16 %v172
    %v559 = vunpack.c.h.b16 %v172
    %v560 = vunpack.c.l.b16 %v173
    %v561 = vunpack.c.h.b16 %v173
    %v562 = vunpack.c.l.b16 %v174
    %v563 = vunpack.c.h.b16 %v174
    %v564 = vunpack.c.l.b16 %v175
    %v565 = vunpack.c.h.b16 %v175
    %v566 = vunpack.c.l.b16 %v176
    %v567 = vunpack.c.h.b16 %v176
    %v568 = vunpack.c.l.b16 %v177
    %v569 = vunpack.c.h.b16 %v177
    %v570 = vunpack.c.l.b16 %v178
    %v571 = vunpack.c.h.b16 %v178
    %v572 = vunpack.c.l.b16 %v179
    %v573 = vunpack.c.h.b16 %v179
    %v574 = vunpack.c.l.b16 %v180
    %v575 = vunpack.c.h.b16 %v180
    %v576 = vunpack.c.l.b16 %v181
    %v577 = vunpack.c.h.b16 %v181
    %v578 = vunpack.c.l.b16 %v182
    %v579 = vunpack.c.h.b16 %v182
    %v580 = vunpack.c.l.b16 %v183
    %v581 = vunpack.c.h.b16 %v183
    %v582 = vunpack.c.l.b16 %v184
    %v583 = vunpack.c.h.b16 %v184
    %v584 = vunpack.c.l.b16 %v185
    %v585 = vunpack.c.h.b16 %v185
    %v586 = vunpack.c.l.b16 %v186
    %v587 = vunpack.c.h.b16 %v186
    %v588 = vunpack.c.l.b16 %v187
    %v589 = vunpack.c.h.b16 %v187
    %v590 = vunpack.c.l.b16 %v188
    %v591 = vunpack.c.h.b16 %v188
    %v592 = vunpack.c.l.b16 %v189
    %v593 = vunpack.c.h.b16 %v189
    %v594 = vunpack.c.l.b16 %v190
    %v595 = vunpack.c.h.b16 %v190
    %v596 = vunpack.c.l.b16 %v191
    %v597 = vunpack.c.h.b16 %v191
    %v598 = vunpack.c.l.b16 %v192
    %v599 = vunpack.c.h.b16 %v192
    %v600 = vpack.c.b16 %v480, %v472
    %v601 = vpack.c.b16 %v481, %v473
    %v602 = vpack.c.b16 %v482, %v474
    %v603 = vpack.c.b16 %v483, %v475
    %v604 = vpack.c.b16 %v484, %v476
    %v605 = vpack.c.b16 %v485, %v477
    %v606 = vpack.c.b16 %v486, %v478
    %v607 = vpack.c.b16 %v487, %v479
    %v608 = vpack.c.b16 %v496, %v488
    %v609 = vpack.c.b16 %v497, %v489
    %v610 = vpack.c.b16 %v498, %v490
    %v611 = vpack.c.b16 %v499, %v491
    %v612 = vpack.c.b16 %v500, %v492
    %v613 = vpack.c.b16 %v501, %v493
    %v614 = vpack.c.b16 %v502, %v494
    %v615 = vpack.c.b16 %v503, %v495
    %v616 = vpack.c.b16 %v512, %v504
    %v617 = vpack.c.b16 %v513, %v505
    %v618 = vpack.c.b16 %v514, %v506
    %v619 = vpack.c.b16 %v515, %v507
    %v620 = vpack.c.b16 %v516, %v508
    %v621 = vpack.c.b16 %v517, %v509
    %v622 = vpack.c.b16 %v518, %v510
    %v623 = vpack.c.b16 %v519, %v511
    %v624 = vpack.c.b16 %v528, %v520
    %v625 = vpack.c.b16 %v529, %v521
    %v626 = vpack.c.b16 %v530, %v522
    %v627 = vpack.c.b16 %v531, %v523
    %v628 = vpack.c.b16 %v532, %v524
    %v629 = vpack.c.b16 %v533, %v525
    %v630 = vpack.c.b16 %v534, %v526
    %v631 = vpack.c.b16 %v535, %v527
    %v632 = vpack.c.b16 %v544, %v536
    %v633 = vpack.c.b16 %v545, %v537
    %v634 = vpack.c.b16 %v546, %v538
    %v635 = vpack.c.b16 %v547, %v539
    %v636 = vpack.c.b16 %v548, %v540
    %v637 = vpack.c.b16 %v549, %v541
    %v638 = vpack.c.b16 %v550, %v542
    %v639 = vpack.c.b16 %v551, %v543
    %v640 = vpack.c.b16 %v560, %v552
    %v641 = vpack.c.b16 %v561, %v553
    %v642 = vpack.c.b16 %v562, %v554
    %v643 = vpack.c.b16 %v563, %v555
    %v644 = vpack.c.b16 %v564, %v556
    %v645 = vpack.c.b16 %v565, %v557
    %v646 = vpack.c.b16 %v566, %v558
    %v647 = vpack.c.b16 %v567, %v559
    %v648 = vpack.c.b16 %v576, %v568
    %v649 = vpack.c.b16 %v577, %v569
    %v650 = vpack.c.b16 %v578, %v570
    %v651 = vpack.c.b16 %v579, %v571
    %v652 = vpack.c.b16 %v580, %v572
    %v653 = vpack.c.b16 %v581, %v573
    %v654 = vpack.c.b16 %v582, %v574
    %v655 = vpack.c.b16 %v583, %v575
    %v656 = vpack.c.b16 %v592, %v584
    %v657 = vpack.c.b16 %v593, %v585
    %v658 = vpack.c.b16 %v594, %v586
    %v659 = vpack.c.b16 %v595, %v587
    %v660 = vpack.c.b16 %v596, %v588
    %v661 = vpack.c.b16 %v597, %v589
    %v662 = vpack.c.b16 %v598, %v590
    %v663 = vpack.c.b16 %v599, %v591
    %728 = vmatprep.subr.bf16.mxu0 %v601
    %729 = vmatpush1.bf16.msra.mxu0 %v600
    %730 = vmatprep.subr.bf16.mxu0 %v609
    %731 = vmatpush1.bf16.msra.mxu0 %v608
    %732 = vmatprep.subr.bf16.mxu0 %v617
    %733 = vmatpush1.bf16.msra.mxu0 %v616
    %734 = vmatprep.subr.bf16.mxu0 %v625
    %735 = vmatpush1.bf16.msra.mxu0 %v624
    %736 = vmatprep.subr.bf16.mxu0 %v633
    %737 = vmatpush1.bf16.msra.mxu0 %v632
    %738 = vmatprep.subr.bf16.mxu0 %v641
    %739 = vmatpush1.bf16.msra.mxu0 %v640
    %740 = vmatprep.subr.bf16.mxu0 %v649
    %741 = vmatpush1.bf16.msra.mxu0 %v648
    %742 = vmatprep.subr.bf16.mxu0 %v657
    %743 = vmatpush1.bf16.msra.mxu0 %v656
    %744 = vmatprep.subr.bf16.mxu0 0
    %745 = vmatpush1.bf16.msra.mxu0 0
    %746 = vmatprep.subr.bf16.mxu0 0
    %747 = vmatpush1.bf16.msra.mxu0 0
    %748 = vmatprep.subr.bf16.mxu0 0
    %749 = vmatpush1.bf16.msra.mxu0 0
    %750 = vmatprep.subr.bf16.mxu0 0
    %751 = vmatpush1.bf16.msra.mxu0 0
    %752 = vmatprep.subr.bf16.mxu0 0
    %753 = vmatpush1.bf16.msra.mxu0 0
    %754 = vmatprep.subr.bf16.mxu0 0
    %755 = vmatpush1.bf16.msra.mxu0 0
    %756 = vmatprep.subr.bf16.mxu0 0
    %757 = vmatpush1.bf16.msra.mxu0 0
    %758 = vmatprep.subr.bf16.mxu0 0
    %759 = vmatpush1.bf16.msra.mxu0 0
    %760 = vmatprep.mubr.bf16.mxu0 0
    %761 = vmatmul.mubr.bf16.gmra.mrb[0].mxu0 %v406
    %v762 = vpop.f32.mrb[0].mxu0
    %v763 = vadd.f32 %v365, %v762
    %v764 = vpop.f32.mrb[0].mxu0
    %v765 = vadd.f32 %v369, %v764
    %v766 = vpop.f32.mrb[0].mxu0
    %v767 = vadd.f32 %v365, %v766
    %v768 = vpop.f32.mrb[0].mxu0
    %v769 = vadd.f32 %v369, %v768
    %770 = vdwg.mxu0
    %771 = vmatprep.subr.bf16.mxu0 %v603
    %772 = vmatpush1.bf16.msra.mxu0 %v602
    %773 = vmatprep.subr.bf16.mxu0 %v611
    %774 = vmatpush1.bf16.msra.mxu0 %v610
    %775 = vmatprep.subr.bf16.mxu0 %v619
    %776 = vmatpush1.bf16.msra.mxu0 %v618
    %777 = vmatprep.subr.bf16.mxu0 %v627
    %778 = vmatpush1.bf16.msra.mxu0 %v626
    %779 = vmatprep.subr.bf16.mxu0 %v635
    %780 = vmatpush1.bf16.msra.mxu0 %v634
    %781 = vmatprep.subr.bf16.mxu0 %v643
    %782 = vmatpush1.bf16.msra.mxu0 %v642
    %783 = vmatprep.subr.bf16.mxu0 %v651
    %784 = vmatpush1.bf16.msra.mxu0 %v650
    %785 = vmatprep.subr.bf16.mxu0 %v659
    %786 = vmatpush1.bf16.msra.mxu0 %v658
    %787 = vmatprep.subr.bf16.mxu0 0
    %788 = vmatpush1.bf16.msra.mxu0 0
    %789 = vmatprep.subr.bf16.mxu0 0
    %790 = vmatpush1.bf16.msra.mxu0 0
    %791 = vmatprep.subr.bf16.mxu0 0
    %792 = vmatpush1.bf16.msra.mxu0 0
    %793 = vmatprep.subr.bf16.mxu0 0
    %794 = vmatpush1.bf16.msra.mxu0 0
    %795 = vmatprep.subr.bf16.mxu0 0
    %796 = vmatpush1.bf16.msra.mxu0 0
    %797 = vmatprep.subr.bf16.mxu0 0
    %798 = vmatpush1.bf16.msra.mxu0 0
    %799 = vmatprep.subr.bf16.mxu0 0
    %800 = vmatpush1.bf16.msra.mxu0 0
    %801 = vmatprep.subr.bf16.mxu0 0
    %802 = vmatpush1.bf16.msra.mxu0 0
    %803 = vmatprep.mubr.bf16.mxu0 0
    %804 = vmatmul.mubr.bf16.gmra.mrb[0].mxu0 %v406
    %v805 = vpop.f32.mrb[0].mxu0
    %v806 = vadd.f32 %v373, %v805
    %v807 = vpop.f32.mrb[0].mxu0
    %v808 = vadd.f32 %v377, %v807
    %v809 = vpop.f32.mrb[0].mxu0
    %v810 = vadd.f32 %v373, %v809
    %v811 = vpop.f32.mrb[0].mxu0
    %v812 = vadd.f32 %v377, %v811
    %813 = vdwg.mxu0
    %814 = vmatprep.subr.bf16.mxu0 %v605
    %815 = vmatpush1.bf16.msra.mxu0 %v604
    %816 = vmatprep.subr.bf16.mxu0 %v613
    %817 = vmatpush1.bf16.msra.mxu0 %v612
    %818 = vmatprep.subr.bf16.mxu0 %v621
    %819 = vmatpush1.bf16.msra.mxu0 %v620
    %820 = vmatprep.subr.bf16.mxu0 %v629
    %821 = vmatpush1.bf16.msra.mxu0 %v628
    %822 = vmatprep.subr.bf16.mxu0 %v637
    %823 = vmatpush1.bf16.msra.mxu0 %v636
    %824 = vmatprep.subr.bf16.mxu0 %v645
    %825 = vmatpush1.bf16.msra.mxu0 %v644
    %826 = vmatprep.subr.bf16.mxu0 %v653
    %827 = vmatpush1.bf16.msra.mxu0 %v652
    %828 = vmatprep.subr.bf16.mxu0 %v661
    %829 = vmatpush1.bf16.msra.mxu0 %v660
    %830 = vmatprep.subr.bf16.mxu0 0
    %831 = vmatpush1.bf16.msra.mxu0 0
    %832 = vmatprep.subr.bf16.mxu0 0
    %833 = vmatpush1.bf16.msra.mxu0 0
    %834 = vmatprep.subr.bf16.mxu0 0
    %835 = vmatpush1.bf16.msra.mxu0 0
    %836 = vmatprep.subr.bf16.mxu0 0
    %837 = vmatpush1.bf16.msra.mxu0 0
    %838 = vmatprep.subr.bf16.mxu0 0
    %839 = vmatpush1.bf16.msra.mxu0 0
    %840 = vmatprep.subr.bf16.mxu0 0
    %841 = vmatpush1.bf16.msra.mxu0 0
    %842 = vmatprep.subr.bf16.mxu0 0
    %843 = vmatpush1.bf16.msra.mxu0 0
    %844 = vmatprep.subr.bf16.mxu0 0
    %845 = vmatpush1.bf16.msra.mxu0 0
    %846 = vmatprep.mubr.bf16.mxu0 0
    %847 = vmatmul.mubr.bf16.gmra.mrb[0].mxu0 %v406
    %v848 = vpop.f32.mrb[0].mxu0
    %v849 = vadd.f32 %v381, %v848
    %v850 = vpop.f32.mrb[0].mxu0
    %v851 = vadd.f32 %v385, %v850
    %v852 = vpop.f32.mrb[0].mxu0
    %v853 = vadd.f32 %v381, %v852
    %v854 = vpop.f32.mrb[0].mxu0
    %v855 = vadd.f32 %v385, %v854
    %856 = vdwg.mxu0
    %857 = vmatprep.subr.bf16.mxu0 %v607
    %858 = vmatpush1.bf16.msra.mxu0 %v606
    %859 = vmatprep.subr.bf16.mxu0 %v615
    %860 = vmatpush1.bf16.msra.mxu0 %v614
    %861 = vmatprep.subr.bf16.mxu0 %v623
    %862 = vmatpush1.bf16.msra.mxu0 %v622
    %863 = vmatprep.subr.bf16.mxu0 %v631
    %864 = vmatpush1.bf16.msra.mxu0 %v630
    %865 = vmatprep.subr.bf16.mxu0 %v639
    %866 = vmatpush1.bf16.msra.mxu0 %v638
    %867 = vmatprep.subr.bf16.mxu0 %v647
    %868 = vmatpush1.bf16.msra.mxu0 %v646
    %869 = vmatprep.subr.bf16.mxu0 %v655
    %870 = vmatpush1.bf16.msra.mxu0 %v654
    %871 = vmatprep.subr.bf16.mxu0 %v663
    %872 = vmatpush1.bf16.msra.mxu0 %v662
    %873 = vmatprep.subr.bf16.mxu0 0
    %874 = vmatpush1.bf16.msra.mxu0 0
    %875 = vmatprep.subr.bf16.mxu0 0
    %876 = vmatpush1.bf16.msra.mxu0 0
    %877 = vmatprep.subr.bf16.mxu0 0
    %878 = vmatpush1.bf16.msra.mxu0 0
    %879 = vmatprep.subr.bf16.mxu0 0
    %880 = vmatpush1.bf16.msra.mxu0 0
    %881 = vmatprep.subr.bf16.mxu0 0
    %882 = vmatpush1.bf16.msra.mxu0 0
    %883 = vmatprep.subr.bf16.mxu0 0
    %884 = vmatpush1.bf16.msra.mxu0 0
    %885 = vmatprep.subr.bf16.mxu0 0
    %886 = vmatpush1.bf16.msra.mxu0 0
    %887 = vmatprep.subr.bf16.mxu0 0
    %888 = vmatpush1.bf16.msra.mxu0 0
    %889 = vmatprep.mubr.bf16.mxu0 0
    %890 = vmatmul.mubr.bf16.gmra.mrb[0].mxu0 %v406
    %v891 = vpop.f32.mrb[0].mxu0
    %v892 = vadd.f32 %v389, %v891
    %v893 = vpop.f32.mrb[0].mxu0
    %v894 = vadd.f32 %v393, %v893
    %v895 = vpop.f32.mrb[0].mxu0
    %v896 = vadd.f32 %v389, %v895
    %v897 = vpop.f32.mrb[0].mxu0
    %v898 = vadd.f32 %v393, %v897
    %899 = vdwg.mxu0
    %v908 = vunpack.c.l.b16 %v194
    %v909 = vunpack.c.h.b16 %v194
    %v910 = vunpack.c.l.b16 %v195
    %v911 = vunpack.c.h.b16 %v195
    %v912 = vunpack.c.l.b16 %v196
    %v913 = vunpack.c.h.b16 %v196
    %v914 = vunpack.c.l.b16 %v197
    %v915 = vunpack.c.h.b16 %v197
    %v916 = vunpack.c.l.b16 %v198
    %v917 = vunpack.c.h.b16 %v198
    %v918 = vunpack.c.l.b16 %v199
    %v919 = vunpack.c.h.b16 %v199
    %v920 = vunpack.c.l.b16 %v200
    %v921 = vunpack.c.h.b16 %v200
    %v922 = vunpack.c.l.b16 %v201
    %v923 = vunpack.c.h.b16 %v201
    %v924 = vpack.c.b16 %v910, %v908
    %v925 = vpack.c.b16 %v911, %v909
    %v926 = vpack.c.b16 %v914, %v912
    %v927 = vpack.c.b16 %v915, %v913
    %v928 = vpack.c.b16 %v918, %v916
    %v929 = vpack.c.b16 %v919, %v917
    %v930 = vpack.c.b16 %v922, %v920
    %v931 = vpack.c.b16 %v923, %v921
    %vm940 = vcmask 523264
    %v942 = vsel %vm940, 0, 0
    %944 = vmatprep.subr.bf16.mxu0 %v925
    %945 = vmatpush1.bf16.msra.mxu0 %v924
    %946 = vmatprep.subr.bf16.mxu0 %v927
    %947 = vmatpush1.bf16.msra.mxu0 %v926
    %948 = vmatprep.subr.bf16.mxu0 %v929
    %949 = vmatpush1.bf16.msra.mxu0 %v928
    %950 = vmatprep.subr.bf16.mxu0 %v931
    %951 = vmatpush1.bf16.msra.mxu0 %v930
    %952 = vmatprep.subr.bf16.mxu0 0
    %953 = vmatpush1.bf16.msra.mxu0 0
    %954 = vmatprep.subr.bf16.mxu0 0
    %955 = vmatpush1.bf16.msra.mxu0 0
    %956 = vmatprep.subr.bf16.mxu0 0
    %957 = vmatpush1.bf16.msra.mxu0 0
    %958 = vmatprep.subr.bf16.mxu0 0
    %959 = vmatpush1.bf16.msra.mxu0 0
    %960 = vmatprep.subr.bf16.mxu0 0
    %961 = vmatpush1.bf16.msra.mxu0 0
    %962 = vmatprep.subr.bf16.mxu0 0
    %963 = vmatpush1.bf16.msra.mxu0 0
    %964 = vmatprep.subr.bf16.mxu0 0
    %965 = vmatpush1.bf16.msra.mxu0 0
    %966 = vmatprep.subr.bf16.mxu0 0
    %967 = vmatpush1.bf16.msra.mxu0 0
    %968 = vmatprep.subr.bf16.mxu0 0
    %969 = vmatpush1.bf16.msra.mxu0 0
    %970 = vmatprep.subr.bf16.mxu0 0
    %971 = vmatpush1.bf16.msra.mxu0 0
    %972 = vmatprep.subr.bf16.mxu0 0
    %973 = vmatpush1.bf16.msra.mxu0 0
    %974 = vmatprep.subr.bf16.mxu0 0
    %975 = vmatpush1.bf16.msra.mxu0 0
    %976 = vmatprep.mubr.bf16.mxu0 0
    %977 = vmatmul.mubr.bf16.gmra.mrb[0].mxu0 %v942
    %v978 = vpop.f32.mrb[0].mxu0
    %v979 = vadd.f32 0.0, %v978
    %v980 = vpop.f32.mrb[0].mxu0
    %v981 = vadd.f32 0.0, %v980
    %v982 = vpop.f32.mrb[0].mxu0
    %v983 = vadd.f32 0.0, %v982
    %v984 = vpop.f32.mrb[0].mxu0
    %v985 = vadd.f32 0.0, %v984
    %986 = vdwg.mxu0
    %v987 = vadd.f32 %v763, %v979
    %v988 = vadd.f32 %v765, %v981
    %v989 = vadd.f32 %v767, %v983
    %v990 = vadd.f32 %v769, %v985
    %v991 = vxor.u32 %v987, 2147483648
    %v992 = vxor.u32 %v988, 2147483648
    %v993 = vxor.u32 %v989, 2147483648
    %v994 = vxor.u32 %v990, 2147483648
    %v995 = vmul.f32 %v991, 1.442695
    %v996 = vpow.pop %v995
    %v997 = vmul.f32 %v992, 1.442695
    %v998 = vpow.pop %v997
    %v999 = vmul.f32 %v993, 1.442695
    %v1000 = vpow.pop %v999
    %v1001 = vmul.f32 %v994, 1.442695
    %v1002 = vpow.pop %v1001
    %v1003 = vadd.f32 %v996, 1.0
    %v1004 = vadd.f32 %v998, 1.0
    %v1005 = vadd.f32 %v1000, 1.0
    %v1006 = vadd.f32 %v1002, 1.0
    %v1007 = vrcp.pop %v1003
    %v1008 = vmul.f32 1.0, %v1007
    %v1009 = vrcp.pop %v1004
    %v1010 = vmul.f32 1.0, %v1009
    %v1011 = vrcp.pop %v1005
    %v1012 = vmul.f32 1.0, %v1011
    %v1013 = vrcp.pop %v1006
    %v1014 = vmul.f32 1.0, %v1013
    %v1015 = vmul.f32 %v1008, %v357
    %v1016 = vmul.f32 %v1010, %v358
    %v1017 = vmul.f32 %v1012, %v357
    %v1018 = vmul.f32 %v1014, %v358
    %v1019 = vadd.f32 %v1015, %v359
    %v1020 = vadd.f32 %v1016, %v360
    %v1021 = vadd.f32 %v1017, %v359
    %v1022 = vadd.f32 %v1018, %v360
    %v1023 = vmul.f32 %v1019, 0.0
    %v1024 = vmul.f32 %v1021, 0.0
    %v1025 = vmul.f32 %v1019, %v1020
    %v1026 = vmul.f32 %v1021, %v1022
    %1029 = vrot.lane.b32.xlu0 %v1025, 64
    %v1030 = vpop.permute.xlu0 %1029
    %1031 = vrot.lane.b32.xlu0 %v1026, 64
    %v1032 = vpop.permute.xlu0 %1031
    %v1035 = vadd.f32 %v1023, %v1030
    %v1036 = vadd.f32 %v1024, %v1032
    %v1037 = vtanh.pop %v1035
    %v1038 = vtanh.pop %v1036
    %v1039 = vmul.f32 %v1020, %v1037
    %v1040 = vmul.f32 %v1022, %v1038
    %v1041 = vpack.c.bf16 %v1040, %v1039
    %1043 = vrot.lane.b32.xlu0 %v1041, 64
    %v1044 = vpop.permute.xlu0 %1043
    %v1046 = vsel %vm940, %v1044, 0
    %1048 = vmatprep.subr.bf16.mxu0 %v925
    %1049 = vmatpush1.bf16.msra.mxu0 %v924
    %1050 = vmatprep.subr.bf16.mxu0 %v927
    %1051 = vmatpush1.bf16.msra.mxu0 %v926
    %1052 = vmatprep.subr.bf16.mxu0 %v929
    %1053 = vmatpush1.bf16.msra.mxu0 %v928
    %1054 = vmatprep.subr.bf16.mxu0 %v931
    %1055 = vmatpush1.bf16.msra.mxu0 %v930
    %1056 = vmatprep.subr.bf16.mxu0 0
    %1057 = vmatpush1.bf16.msra.mxu0 0
    %1058 = vmatprep.subr.bf16.mxu0 0
    %1059 = vmatpush1.bf16.msra.mxu0 0
    %1060 = vmatprep.subr.bf16.mxu0 0
    %1061 = vmatpush1.bf16.msra.mxu0 0
    %1062 = vmatprep.subr.bf16.mxu0 0
    %1063 = vmatpush1.bf16.msra.mxu0 0
    %1064 = vmatprep.subr.bf16.mxu0 0
    %1065 = vmatpush1.bf16.msra.mxu0 0
    %1066 = vmatprep.subr.bf16.mxu0 0
    %1067 = vmatpush1.bf16.msra.mxu0 0
    %1068 = vmatprep.subr.bf16.mxu0 0
    %1069 = vmatpush1.bf16.msra.mxu0 0
    %1070 = vmatprep.subr.bf16.mxu0 0
    %1071 = vmatpush1.bf16.msra.mxu0 0
    %1072 = vmatprep.subr.bf16.mxu0 0
    %1073 = vmatpush1.bf16.msra.mxu0 0
    %1074 = vmatprep.subr.bf16.mxu0 0
    %1075 = vmatpush1.bf16.msra.mxu0 0
    %1076 = vmatprep.subr.bf16.mxu0 0
    %1077 = vmatpush1.bf16.msra.mxu0 0
    %1078 = vmatprep.subr.bf16.mxu0 0
    %1079 = vmatpush1.bf16.msra.mxu0 0
    %1080 = vmatprep.mubr.bf16.mxu0 0
    %1081 = vmatmul.mubr.bf16.gmra.mrb[0].mxu0 %v1046
    %v1082 = vpop.f32.mrb[0].mxu0
    %v1083 = vadd.f32 0.0, %v1082
    %v1084 = vpop.f32.mrb[0].mxu0
    %v1085 = vadd.f32 0.0, %v1084
    %v1086 = vpop.f32.mrb[0].mxu0
    %v1087 = vadd.f32 0.0, %v1086
    %v1088 = vpop.f32.mrb[0].mxu0
    %v1089 = vadd.f32 0.0, %v1088
    %1090 = vdwg.mxu0
    %v1091 = vadd.f32 %v806, %v1083
    %v1092 = vadd.f32 %v808, %v1085
    %v1093 = vadd.f32 %v810, %v1087
    %v1094 = vadd.f32 %v812, %v1089
    %v1095 = vxor.u32 %v1091, 2147483648
    %v1096 = vxor.u32 %v1092, 2147483648
    %v1097 = vxor.u32 %v1093, 2147483648
    %v1098 = vxor.u32 %v1094, 2147483648
    %v1099 = vmul.f32 %v1095, 1.442695
    %v1100 = vpow.pop %v1099
    %v1101 = vmul.f32 %v1096, 1.442695
    %v1102 = vpow.pop %v1101
    %v1103 = vmul.f32 %v1097, 1.442695
    %v1104 = vpow.pop %v1103
    %v1105 = vmul.f32 %v1098, 1.442695
    %v1106 = vpow.pop %v1105
    %v1107 = vadd.f32 %v1100, 1.0
    %v1108 = vadd.f32 %v1102, 1.0
    %v1109 = vadd.f32 %v1104, 1.0
    %v1110 = vadd.f32 %v1106, 1.0
    %v1111 = vrcp.pop %v1107
    %v1112 = vmul.f32 1.0, %v1111
    %v1113 = vrcp.pop %v1108
    %v1114 = vmul.f32 1.0, %v1113
    %v1115 = vrcp.pop %v1109
    %v1116 = vmul.f32 1.0, %v1115
    %v1117 = vrcp.pop %v1110
    %v1118 = vmul.f32 1.0, %v1117
    %v1119 = vmul.f32 %v1112, %v357
    %v1120 = vmul.f32 %v1114, %v358
    %v1121 = vmul.f32 %v1116, %v357
    %v1122 = vmul.f32 %v1118, %v358
    %v1123 = vadd.f32 %v1119, %v359
    %v1124 = vadd.f32 %v1120, %v360
    %v1125 = vadd.f32 %v1121, %v359
    %v1126 = vadd.f32 %v1122, %v360
    %v1127 = vmul.f32 %v1123, %v1035
    %v1128 = vmul.f32 %v1125, %v1036
    %v1129 = vmul.f32 %v1123, %v1124
    %v1130 = vmul.f32 %v1125, %v1126
    %1133 = vrot.lane.b32.xlu0 %v1129, 64
    %v1134 = vpop.permute.xlu0 %1133
    %1135 = vrot.lane.b32.xlu0 %v1130, 64
    %v1136 = vpop.permute.xlu0 %1135
    %v1139 = vadd.f32 %v1127, %v1134
    %v1140 = vadd.f32 %v1128, %v1136
    %v1141 = vtanh.pop %v1139
    %v1142 = vtanh.pop %v1140
    %v1143 = vmul.f32 %v1124, %v1141
    %v1144 = vmul.f32 %v1126, %v1142
    %v1145 = vpack.c.bf16 %v1144, %v1143
    %1147 = vrot.lane.b32.xlu0 %v1145, 64
    %v1148 = vpop.permute.xlu0 %1147
    %v1150 = vsel %vm940, %v1148, 0
    %1152 = vmatprep.subr.bf16.mxu0 %v925
    %1153 = vmatpush1.bf16.msra.mxu0 %v924
    %1154 = vmatprep.subr.bf16.mxu0 %v927
    %1155 = vmatpush1.bf16.msra.mxu0 %v926
    %1156 = vmatprep.subr.bf16.mxu0 %v929
    %1157 = vmatpush1.bf16.msra.mxu0 %v928
    %1158 = vmatprep.subr.bf16.mxu0 %v931
    %1159 = vmatpush1.bf16.msra.mxu0 %v930
    %1160 = vmatprep.subr.bf16.mxu0 0
    %1161 = vmatpush1.bf16.msra.mxu0 0
    %1162 = vmatprep.subr.bf16.mxu0 0
    %1163 = vmatpush1.bf16.msra.mxu0 0
    %1164 = vmatprep.subr.bf16.mxu0 0
    %1165 = vmatpush1.bf16.msra.mxu0 0
    %1166 = vmatprep.subr.bf16.mxu0 0
    %1167 = vmatpush1.bf16.msra.mxu0 0
    %1168 = vmatprep.subr.bf16.mxu0 0
    %1169 = vmatpush1.bf16.msra.mxu0 0
    %1170 = vmatprep.subr.bf16.mxu0 0
    %1171 = vmatpush1.bf16.msra.mxu0 0
    %1172 = vmatprep.subr.bf16.mxu0 0
    %1173 = vmatpush1.bf16.msra.mxu0 0
    %1174 = vmatprep.subr.bf16.mxu0 0
    %1175 = vmatpush1.bf16.msra.mxu0 0
    %1176 = vmatprep.subr.bf16.mxu0 0
    %1177 = vmatpush1.bf16.msra.mxu0 0
    %1178 = vmatprep.subr.bf16.mxu0 0
    %1179 = vmatpush1.bf16.msra.mxu0 0
    %1180 = vmatprep.subr.bf16.mxu0 0
    %1181 = vmatpush1.bf16.msra.mxu0 0
    %1182 = vmatprep.subr.bf16.mxu0 0
    %1183 = vmatpush1.bf16.msra.mxu0 0
    %1184 = vmatprep.mubr.bf16.mxu0 0
    %1185 = vmatmul.mubr.bf16.gmra.mrb[0].mxu0 %v1150
    %v1186 = vpop.f32.mrb[0].mxu0
    %v1187 = vadd.f32 0.0, %v1186
    %v1188 = vpop.f32.mrb[0].mxu0
    %v1189 = vadd.f32 0.0, %v1188
    %v1190 = vpop.f32.mrb[0].mxu0
    %v1191 = vadd.f32 0.0, %v1190
    %v1192 = vpop.f32.mrb[0].mxu0
    %v1193 = vadd.f32 0.0, %v1192
    %1194 = vdwg.mxu0
    %v1195 = vadd.f32 %v849, %v1187
    %v1196 = vadd.f32 %v851, %v1189
    %v1197 = vadd.f32 %v853, %v1191
    %v1198 = vadd.f32 %v855, %v1193
    %v1199 = vxor.u32 %v1195, 2147483648
    %v1200 = vxor.u32 %v1196, 2147483648
    %v1201 = vxor.u32 %v1197, 2147483648
    %v1202 = vxor.u32 %v1198, 2147483648
    %v1203 = vmul.f32 %v1199, 1.442695
    %v1204 = vpow.pop %v1203
    %v1205 = vmul.f32 %v1200, 1.442695
    %v1206 = vpow.pop %v1205
    %v1207 = vmul.f32 %v1201, 1.442695
    %v1208 = vpow.pop %v1207
    %v1209 = vmul.f32 %v1202, 1.442695
    %v1210 = vpow.pop %v1209
    %v1211 = vadd.f32 %v1204, 1.0
    %v1212 = vadd.f32 %v1206, 1.0
    %v1213 = vadd.f32 %v1208, 1.0
    %v1214 = vadd.f32 %v1210, 1.0
    %v1215 = vrcp.pop %v1211
    %v1216 = vmul.f32 1.0, %v1215
    %v1217 = vrcp.pop %v1212
    %v1218 = vmul.f32 1.0, %v1217
    %v1219 = vrcp.pop %v1213
    %v1220 = vmul.f32 1.0, %v1219
    %v1221 = vrcp.pop %v1214
    %v1222 = vmul.f32 1.0, %v1221
    %v1223 = vmul.f32 %v1216, %v357
    %v1224 = vmul.f32 %v1218, %v358
    %v1225 = vmul.f32 %v1220, %v357
    %v1226 = vmul.f32 %v1222, %v358
    %v1227 = vadd.f32 %v1223, %v359
    %v1228 = vadd.f32 %v1224, %v360
    %v1229 = vadd.f32 %v1225, %v359
    %v1230 = vadd.f32 %v1226, %v360
    %v1231 = vmul.f32 %v1227, %v1139
    %v1232 = vmul.f32 %v1229, %v1140
    %v1233 = vmul.f32 %v1227, %v1228
    %v1234 = vmul.f32 %v1229, %v1230
    %1237 = vrot.lane.b32.xlu0 %v1233, 64
    %v1238 = vpop.permute.xlu0 %1237
    %1239 = vrot.lane.b32.xlu0 %v1234, 64
    %v1240 = vpop.permute.xlu0 %1239
    %v1243 = vadd.f32 %v1231, %v1238
    %v1244 = vadd.f32 %v1232, %v1240
    %v1245 = vtanh.pop %v1243
    %v1246 = vtanh.pop %v1244
    %v1247 = vmul.f32 %v1228, %v1245
    %v1248 = vmul.f32 %v1230, %v1246
    %v1249 = vpack.c.bf16 %v1248, %v1247
    %1251 = vrot.lane.b32.xlu0 %v1249, 64
    %v1252 = vpop.permute.xlu0 %1251
    %v1254 = vsel %vm940, %v1252, 0
    %1256 = vmatprep.subr.bf16.mxu0 %v925
    %1257 = vmatpush1.bf16.msra.mxu0 %v924
    %1258 = vmatprep.subr.bf16.mxu0 %v927
    %1259 = vmatpush1.bf16.msra.mxu0 %v926
    %1260 = vmatprep.subr.bf16.mxu0 %v929
    %1261 = vmatpush1.bf16.msra.mxu0 %v928
    %1262 = vmatprep.subr.bf16.mxu0 %v931
    %1263 = vmatpush1.bf16.msra.mxu0 %v930
    %1264 = vmatprep.subr.bf16.mxu0 0
    %1265 = vmatpush1.bf16.msra.mxu0 0
    %1266 = vmatprep.subr.bf16.mxu0 0
    %1267 = vmatpush1.bf16.msra.mxu0 0
    %1268 = vmatprep.subr.bf16.mxu0 0
    %1269 = vmatpush1.bf16.msra.mxu0 0
    %1270 = vmatprep.subr.bf16.mxu0 0
    %1271 = vmatpush1.bf16.msra.mxu0 0
    %1272 = vmatprep.subr.bf16.mxu0 0
    %1273 = vmatpush1.bf16.msra.mxu0 0
    %1274 = vmatprep.subr.bf16.mxu0 0
    %1275 = vmatpush1.bf16.msra.mxu0 0
    %1276 = vmatprep.subr.bf16.mxu0 0
    %1277 = vmatpush1.bf16.msra.mxu0 0
    %1278 = vmatprep.subr.bf16.mxu0 0
    %1279 = vmatpush1.bf16.msra.mxu0 0
    %1280 = vmatprep.subr.bf16.mxu0 0
    %1281 = vmatpush1.bf16.msra.mxu0 0
    %1282 = vmatprep.subr.bf16.mxu0 0
    %1283 = vmatpush1.bf16.msra.mxu0 0
    %1284 = vmatprep.subr.bf16.mxu0 0
    %1285 = vmatpush1.bf16.msra.mxu0 0
    %1286 = vmatprep.subr.bf16.mxu0 0
    %1287 = vmatpush1.bf16.msra.mxu0 0
    %1288 = vmatprep.mubr.bf16.mxu0 0
    %1289 = vmatmul.mubr.bf16.gmra.mrb[0].mxu0 %v1254
    %v1290 = vpop.f32.mrb[0].mxu0
    %v1291 = vadd.f32 0.0, %v1290
    %v1292 = vpop.f32.mrb[0].mxu0
    %v1293 = vadd.f32 0.0, %v1292
    %v1294 = vpop.f32.mrb[0].mxu0
    %v1295 = vadd.f32 0.0, %v1294
    %v1296 = vpop.f32.mrb[0].mxu0
    %v1297 = vadd.f32 0.0, %v1296
    %1298 = vdwg.mxu0
    %v1299 = vadd.f32 %v892, %v1291
    %v1300 = vadd.f32 %v894, %v1293
    %v1301 = vadd.f32 %v896, %v1295
    %v1302 = vadd.f32 %v898, %v1297
    %v1303 = vxor.u32 %v1299, 2147483648
    %v1304 = vxor.u32 %v1300, 2147483648
    %v1305 = vxor.u32 %v1301, 2147483648
    %v1306 = vxor.u32 %v1302, 2147483648
    %v1307 = vmul.f32 %v1303, 1.442695
    %v1308 = vpow.pop %v1307
    %v1309 = vmul.f32 %v1304, 1.442695
    %v1310 = vpow.pop %v1309
    %v1311 = vmul.f32 %v1305, 1.442695
    %v1312 = vpow.pop %v1311
    %v1313 = vmul.f32 %v1306, 1.442695
    %v1314 = vpow.pop %v1313
    %v1315 = vadd.f32 %v1308, 1.0
    %v1316 = vadd.f32 %v1310, 1.0
    %v1317 = vadd.f32 %v1312, 1.0
    %v1318 = vadd.f32 %v1314, 1.0
    %v1319 = vrcp.pop %v1315
    %v1320 = vmul.f32 1.0, %v1319
    %v1321 = vrcp.pop %v1316
    %v1322 = vmul.f32 1.0, %v1321
    %v1323 = vrcp.pop %v1317
    %v1324 = vmul.f32 1.0, %v1323
    %v1325 = vrcp.pop %v1318
    %v1326 = vmul.f32 1.0, %v1325
    %v1327 = vmul.f32 %v1320, %v357
    %v1328 = vmul.f32 %v1322, %v358
    %v1329 = vmul.f32 %v1324, %v357
    %v1330 = vmul.f32 %v1326, %v358
    %v1331 = vadd.f32 %v1327, %v359
    %v1332 = vadd.f32 %v1328, %v360
    %v1333 = vadd.f32 %v1329, %v359
    %v1334 = vadd.f32 %v1330, %v360
    %v1335 = vmul.f32 %v1331, %v1243
    %v1336 = vmul.f32 %v1333, %v1244
    %v1337 = vmul.f32 %v1331, %v1332
    %v1338 = vmul.f32 %v1333, %v1334
    %1341 = vrot.lane.b32.xlu0 %v1337, 64
    %v1342 = vpop.permute.xlu0 %1341
    %1343 = vrot.lane.b32.xlu0 %v1338, 64
    %v1344 = vpop.permute.xlu0 %1343
    %v1347 = vadd.f32 %v1335, %v1342
    %v1348 = vadd.f32 %v1336, %v1344
    %v1349 = vtanh.pop %v1347
    %v1350 = vtanh.pop %v1348
    %v1351 = vmul.f32 %v1332, %v1349
    %v1352 = vmul.f32 %v1334, %v1350
    %1355 = vrot.lane.b32.xlu0 %v1039, 64
    %v1356 = vpop.permute.xlu0 %1355
    %1357 = vrot.lane.b32.xlu0 %v1040, 64
    %v1358 = vpop.permute.xlu0 %1357
    %1363 = vrot.lane.b32.xlu0 %v1247, 64
    %v1364 = vpop.permute.xlu0 %1363
    %1365 = vrot.lane.b32.xlu0 %v1248, 64
    %v1366 = vpop.permute.xlu0 %1365
    %v1369 = vsel %vm940, %v1356, %v1143
    %v1370 = vsel %vm940, %v1358, %v1144
    %v1371 = vsel %vm940, %v1364, %v1351
    %v1372 = vsel %vm940, %v1366, %v1352
    %v1373 = vpack.c.bf16 %v1370, %v1369
    %v1374 = vpack.c.bf16 %v1372, %v1371
    %v1376 = vlaneseq
    %v1377 = vshrl.u32 %v1376, 7
    %v1378 = vsub.s32 0, %v1377
    %v1379 = vrot.slane %v330, %v1378
    %v1380 = vlaneseq
    %v1381 = vshrl.u32 %v1380, 7
    %v1382 = vsub.s32 1, %v1381
    %v1383 = vrot.slane %v330, %v1382
    %v1384 = vlaneseq
    %v1385 = vshrl.u32 %v1384, 7
    %v1386 = vsub.s32 2, %v1385
    %v1387 = vrot.slane %v330, %v1386
    %v1388 = vlaneseq
    %v1389 = vshrl.u32 %v1388, 7
    %v1390 = vsub.s32 3, %v1389
    %v1391 = vrot.slane %v330, %v1390
    %v1392 = vlaneseq
    %v1393 = vshrl.u32 %v1392, 7
    %v1394 = vsub.s32 4, %v1393
    %v1395 = vrot.slane %v330, %v1394
    %v1396 = vlaneseq
    %v1397 = vshrl.u32 %v1396, 7
    %v1398 = vsub.s32 5, %v1397
    %v1399 = vrot.slane %v330, %v1398
    %v1400 = vlaneseq
    %v1401 = vshrl.u32 %v1400, 7
    %v1402 = vsub.s32 6, %v1401
    %v1403 = vrot.slane %v330, %v1402
    %v1404 = vlaneseq
    %v1405 = vshrl.u32 %v1404, 7
    %v1406 = vsub.s32 7, %v1405
    %v1407 = vrot.slane %v330, %v1406
    %v1544 = vunpack.c.l.b16 %v202
    %v1545 = vunpack.c.h.b16 %v202
    %v1546 = vunpack.c.l.b16 %v203
    %v1547 = vunpack.c.h.b16 %v203
    %v1548 = vunpack.c.l.b16 %v204
    %v1549 = vunpack.c.h.b16 %v204
    %v1550 = vunpack.c.l.b16 %v205
    %v1551 = vunpack.c.h.b16 %v205
    %v1552 = vunpack.c.l.b16 %v206
    %v1553 = vunpack.c.h.b16 %v206
    %v1554 = vunpack.c.l.b16 %v207
    %v1555 = vunpack.c.h.b16 %v207
    %v1556 = vunpack.c.l.b16 %v208
    %v1557 = vunpack.c.h.b16 %v208
    %v1558 = vunpack.c.l.b16 %v209
    %v1559 = vunpack.c.h.b16 %v209
    %v1560 = vunpack.c.l.b16 %v210
    %v1561 = vunpack.c.h.b16 %v210
    %v1562 = vunpack.c.l.b16 %v211
    %v1563 = vunpack.c.h.b16 %v211
    %v1564 = vunpack.c.l.b16 %v212
    %v1565 = vunpack.c.h.b16 %v212
    %v1566 = vunpack.c.l.b16 %v213
    %v1567 = vunpack.c.h.b16 %v213
    %v1568 = vunpack.c.l.b16 %v214
    %v1569 = vunpack.c.h.b16 %v214
    %v1570 = vunpack.c.l.b16 %v215
    %v1571 = vunpack.c.h.b16 %v215
    %v1572 = vunpack.c.l.b16 %v216
    %v1573 = vunpack.c.h.b16 %v216
    %v1574 = vunpack.c.l.b16 %v217
    %v1575 = vunpack.c.h.b16 %v217
    %v1576 = vunpack.c.l.b16 %v218
    %v1577 = vunpack.c.h.b16 %v218
    %v1578 = vunpack.c.l.b16 %v219
    %v1579 = vunpack.c.h.b16 %v219
    %v1580 = vunpack.c.l.b16 %v220
    %v1581 = vunpack.c.h.b16 %v220
    %v1582 = vunpack.c.l.b16 %v221
    %v1583 = vunpack.c.h.b16 %v221
    %v1584 = vunpack.c.l.b16 %v222
    %v1585 = vunpack.c.h.b16 %v222
    %v1586 = vunpack.c.l.b16 %v223
    %v1587 = vunpack.c.h.b16 %v223
    %v1588 = vunpack.c.l.b16 %v224
    %v1589 = vunpack.c.h.b16 %v224
    %v1590 = vunpack.c.l.b16 %v225
    %v1591 = vunpack.c.h.b16 %v225
    %v1592 = vunpack.c.l.b16 %v226
    %v1593 = vunpack.c.h.b16 %v226
    %v1594 = vunpack.c.l.b16 %v227
    %v1595 = vunpack.c.h.b16 %v227
    %v1596 = vunpack.c.l.b16 %v228
    %v1597 = vunpack.c.h.b16 %v228
    %v1598 = vunpack.c.l.b16 %v229
    %v1599 = vunpack.c.h.b16 %v229
    %v1600 = vunpack.c.l.b16 %v230
    %v1601 = vunpack.c.h.b16 %v230
    %v1602 = vunpack.c.l.b16 %v231
    %v1603 = vunpack.c.h.b16 %v231
    %v1604 = vunpack.c.l.b16 %v232
    %v1605 = vunpack.c.h.b16 %v232
    %v1606 = vunpack.c.l.b16 %v233
    %v1607 = vunpack.c.h.b16 %v233
    %v1608 = vunpack.c.l.b16 %v234
    %v1609 = vunpack.c.h.b16 %v234
    %v1610 = vunpack.c.l.b16 %v235
    %v1611 = vunpack.c.h.b16 %v235
    %v1612 = vunpack.c.l.b16 %v236
    %v1613 = vunpack.c.h.b16 %v236
    %v1614 = vunpack.c.l.b16 %v237
    %v1615 = vunpack.c.h.b16 %v237
    %v1616 = vunpack.c.l.b16 %v238
    %v1617 = vunpack.c.h.b16 %v238
    %v1618 = vunpack.c.l.b16 %v239
    %v1619 = vunpack.c.h.b16 %v239
    %v1620 = vunpack.c.l.b16 %v240
    %v1621 = vunpack.c.h.b16 %v240
    %v1622 = vunpack.c.l.b16 %v241
    %v1623 = vunpack.c.h.b16 %v241
    %v1624 = vunpack.c.l.b16 %v242
    %v1625 = vunpack.c.h.b16 %v242
    %v1626 = vunpack.c.l.b16 %v243
    %v1627 = vunpack.c.h.b16 %v243
    %v1628 = vunpack.c.l.b16 %v244
    %v1629 = vunpack.c.h.b16 %v244
    %v1630 = vunpack.c.l.b16 %v245
    %v1631 = vunpack.c.h.b16 %v245
    %v1632 = vunpack.c.l.b16 %v246
    %v1633 = vunpack.c.h.b16 %v246
    %v1634 = vunpack.c.l.b16 %v247
    %v1635 = vunpack.c.h.b16 %v247
    %v1636 = vunpack.c.l.b16 %v248
    %v1637 = vunpack.c.h.b16 %v248
    %v1638 = vunpack.c.l.b16 %v249
    %v1639 = vunpack.c.h.b16 %v249
    %v1640 = vunpack.c.l.b16 %v250
    %v1641 = vunpack.c.h.b16 %v250
    %v1642 = vunpack.c.l.b16 %v251
    %v1643 = vunpack.c.h.b16 %v251
    %v1644 = vunpack.c.l.b16 %v252
    %v1645 = vunpack.c.h.b16 %v252
    %v1646 = vunpack.c.l.b16 %v253
    %v1647 = vunpack.c.h.b16 %v253
    %v1648 = vunpack.c.l.b16 %v254
    %v1649 = vunpack.c.h.b16 %v254
    %v1650 = vunpack.c.l.b16 %v255
    %v1651 = vunpack.c.h.b16 %v255
    %v1652 = vunpack.c.l.b16 %v256
    %v1653 = vunpack.c.h.b16 %v256
    %v1654 = vunpack.c.l.b16 %v257
    %v1655 = vunpack.c.h.b16 %v257
    %v1656 = vunpack.c.l.b16 %v258
    %v1657 = vunpack.c.h.b16 %v258
    %v1658 = vunpack.c.l.b16 %v259
    %v1659 = vunpack.c.h.b16 %v259
    %v1660 = vunpack.c.l.b16 %v260
    %v1661 = vunpack.c.h.b16 %v260
    %v1662 = vunpack.c.l.b16 %v261
    %v1663 = vunpack.c.h.b16 %v261
    %v1664 = vunpack.c.l.b16 %v262
    %v1665 = vunpack.c.h.b16 %v262
    %v1666 = vunpack.c.l.b16 %v263
    %v1667 = vunpack.c.h.b16 %v263
    %v1668 = vunpack.c.l.b16 %v264
    %v1669 = vunpack.c.h.b16 %v264
    %v1670 = vunpack.c.l.b16 %v265
    %v1671 = vunpack.c.h.b16 %v265
    %v1672 = vunpack.c.l.b16 %v266
    %v1673 = vunpack.c.h.b16 %v266
    %v1674 = vunpack.c.l.b16 %v267
    %v1675 = vunpack.c.h.b16 %v267
    %v1676 = vunpack.c.l.b16 %v268
    %v1677 = vunpack.c.h.b16 %v268
    %v1678 = vunpack.c.l.b16 %v269
    %v1679 = vunpack.c.h.b16 %v269
    %v1680 = vunpack.c.l.b16 %v270
    %v1681 = vunpack.c.h.b16 %v270
    %v1682 = vunpack.c.l.b16 %v271
    %v1683 = vunpack.c.h.b16 %v271
    %v1684 = vunpack.c.l.b16 %v272
    %v1685 = vunpack.c.h.b16 %v272
    %v1686 = vunpack.c.l.b16 %v273
    %v1687 = vunpack.c.h.b16 %v273
    %v1688 = vunpack.c.l.b16 %v274
    %v1689 = vunpack.c.h.b16 %v274
    %v1690 = vunpack.c.l.b16 %v275
    %v1691 = vunpack.c.h.b16 %v275
    %v1692 = vunpack.c.l.b16 %v276
    %v1693 = vunpack.c.h.b16 %v276
    %v1694 = vunpack.c.l.b16 %v277
    %v1695 = vunpack.c.h.b16 %v277
    %v1696 = vunpack.c.l.b16 %v278
    %v1697 = vunpack.c.h.b16 %v278
    %v1698 = vunpack.c.l.b16 %v279
    %v1699 = vunpack.c.h.b16 %v279
    %v1700 = vunpack.c.l.b16 %v280
    %v1701 = vunpack.c.h.b16 %v280
    %v1702 = vunpack.c.l.b16 %v281
    %v1703 = vunpack.c.h.b16 %v281
    %v1704 = vunpack.c.l.b16 %v282
    %v1705 = vunpack.c.h.b16 %v282
    %v1706 = vunpack.c.l.b16 %v283
    %v1707 = vunpack.c.h.b16 %v283
    %v1708 = vunpack.c.l.b16 %v284
    %v1709 = vunpack.c.h.b16 %v284
    %v1710 = vunpack.c.l.b16 %v285
    %v1711 = vunpack.c.h.b16 %v285
    %v1712 = vunpack.c.l.b16 %v286
    %v1713 = vunpack.c.h.b16 %v286
    %v1714 = vunpack.c.l.b16 %v287
    %v1715 = vunpack.c.h.b16 %v287
    %v1716 = vunpack.c.l.b16 %v288
    %v1717 = vunpack.c.h.b16 %v288
    %v1718 = vunpack.c.l.b16 %v289
    %v1719 = vunpack.c.h.b16 %v289
    %v1720 = vunpack.c.l.b16 %v290
    %v1721 = vunpack.c.h.b16 %v290
    %v1722 = vunpack.c.l.b16 %v291
    %v1723 = vunpack.c.h.b16 %v291
    %v1724 = vunpack.c.l.b16 %v292
    %v1725 = vunpack.c.h.b16 %v292
    %v1726 = vunpack.c.l.b16 %v293
    %v1727 = vunpack.c.h.b16 %v293
    %v1728 = vunpack.c.l.b16 %v294
    %v1729 = vunpack.c.h.b16 %v294
    %v1730 = vunpack.c.l.b16 %v295
    %v1731 = vunpack.c.h.b16 %v295
    %v1732 = vunpack.c.l.b16 %v296
    %v1733 = vunpack.c.h.b16 %v296
    %v1734 = vunpack.c.l.b16 %v297
    %v1735 = vunpack.c.h.b16 %v297
    %v1736 = vunpack.c.l.b16 %v298
    %v1737 = vunpack.c.h.b16 %v298
    %v1738 = vunpack.c.l.b16 %v299
    %v1739 = vunpack.c.h.b16 %v299
    %v1740 = vunpack.c.l.b16 %v300
    %v1741 = vunpack.c.h.b16 %v300
    %v1742 = vunpack.c.l.b16 %v301
    %v1743 = vunpack.c.h.b16 %v301
    %v1744 = vunpack.c.l.b16 %v302
    %v1745 = vunpack.c.h.b16 %v302
    %v1746 = vunpack.c.l.b16 %v303
    %v1747 = vunpack.c.h.b16 %v303
    %v1748 = vunpack.c.l.b16 %v304
    %v1749 = vunpack.c.h.b16 %v304
    %v1750 = vunpack.c.l.b16 %v305
    %v1751 = vunpack.c.h.b16 %v305
    %v1752 = vunpack.c.l.b16 %v306
    %v1753 = vunpack.c.h.b16 %v306
    %v1754 = vunpack.c.l.b16 %v307
    %v1755 = vunpack.c.h.b16 %v307
    %v1756 = vunpack.c.l.b16 %v308
    %v1757 = vunpack.c.h.b16 %v308
    %v1758 = vunpack.c.l.b16 %v309
    %v1759 = vunpack.c.h.b16 %v309
    %v1760 = vunpack.c.l.b16 %v310
    %v1761 = vunpack.c.h.b16 %v310
    %v1762 = vunpack.c.l.b16 %v311
    %v1763 = vunpack.c.h.b16 %v311
    %v1764 = vunpack.c.l.b16 %v312
    %v1765 = vunpack.c.h.b16 %v312
    %v1766 = vunpack.c.l.b16 %v313
    %v1767 = vunpack.c.h.b16 %v313
    %v1768 = vunpack.c.l.b16 %v314
    %v1769 = vunpack.c.h.b16 %v314
    %v1770 = vunpack.c.l.b16 %v315
    %v1771 = vunpack.c.h.b16 %v315
    %v1772 = vunpack.c.l.b16 %v316
    %v1773 = vunpack.c.h.b16 %v316
    %v1774 = vunpack.c.l.b16 %v317
    %v1775 = vunpack.c.h.b16 %v317
    %v1776 = vunpack.c.l.b16 %v318
    %v1777 = vunpack.c.h.b16 %v318
    %v1778 = vunpack.c.l.b16 %v319
    %v1779 = vunpack.c.h.b16 %v319
    %v1780 = vunpack.c.l.b16 %v320
    %v1781 = vunpack.c.h.b16 %v320
    %v1782 = vunpack.c.l.b16 %v321
    %v1783 = vunpack.c.h.b16 %v321
    %v1784 = vunpack.c.l.b16 %v322
    %v1785 = vunpack.c.h.b16 %v322
    %v1786 = vunpack.c.l.b16 %v323
    %v1787 = vunpack.c.h.b16 %v323
    %v1788 = vunpack.c.l.b16 %v324
    %v1789 = vunpack.c.h.b16 %v324
    %v1790 = vunpack.c.l.b16 %v325
    %v1791 = vunpack.c.h.b16 %v325
    %v1792 = vunpack.c.l.b16 %v326
    %v1793 = vunpack.c.h.b16 %v326
    %v1794 = vunpack.c.l.b16 %v327
    %v1795 = vunpack.c.h.b16 %v327
    %v1796 = vunpack.c.l.b16 %v328
    %v1797 = vunpack.c.h.b16 %v328
    %v1798 = vunpack.c.l.b16 %v329
    %v1799 = vunpack.c.h.b16 %v329
    %v1800 = vpack.c.b16 %v1552, %v1544
    %v1801 = vpack.c.b16 %v1553, %v1545
    %v1802 = vpack.c.b16 %v1554, %v1546
    %v1803 = vpack.c.b16 %v1555, %v1547
    %v1804 = vpack.c.b16 %v1556, %v1548
    %v1805 = vpack.c.b16 %v1557, %v1549
    %v1806 = vpack.c.b16 %v1558, %v1550
    %v1807 = vpack.c.b16 %v1559, %v1551
    %v1808 = vpack.c.b16 %v1568, %v1560
    %v1809 = vpack.c.b16 %v1569, %v1561
    %v1810 = vpack.c.b16 %v1570, %v1562
    %v1811 = vpack.c.b16 %v1571, %v1563
    %v1812 = vpack.c.b16 %v1572, %v1564
    %v1813 = vpack.c.b16 %v1573, %v1565
    %v1814 = vpack.c.b16 %v1574, %v1566
    %v1815 = vpack.c.b16 %v1575, %v1567
    %v1816 = vpack.c.b16 %v1584, %v1576
    %v1817 = vpack.c.b16 %v1585, %v1577
    %v1818 = vpack.c.b16 %v1586, %v1578
    %v1819 = vpack.c.b16 %v1587, %v1579
    %v1820 = vpack.c.b16 %v1588, %v1580
    %v1821 = vpack.c.b16 %v1589, %v1581
    %v1822 = vpack.c.b16 %v1590, %v1582
    %v1823 = vpack.c.b16 %v1591, %v1583
    %v1824 = vpack.c.b16 %v1600, %v1592
    %v1825 = vpack.c.b16 %v1601, %v1593
    %v1826 = vpack.c.b16 %v1602, %v1594
    %v1827 = vpack.c.b16 %v1603, %v1595
    %v1828 = vpack.c.b16 %v1604, %v1596
    %v1829 = vpack.c.b16 %v1605, %v1597
    %v1830 = vpack.c.b16 %v1606, %v1598
    %v1831 = vpack.c.b16 %v1607, %v1599
    %v1832 = vpack.c.b16 %v1616, %v1608
    %v1833 = vpack.c.b16 %v1617, %v1609
    %v1834 = vpack.c.b16 %v1618, %v1610
    %v1835 = vpack.c.b16 %v1619, %v1611
    %v1836 = vpack.c.b16 %v1620, %v1612
    %v1837 = vpack.c.b16 %v1621, %v1613
    %v1838 = vpack.c.b16 %v1622, %v1614
    %v1839 = vpack.c.b16 %v1623, %v1615
    %v1840 = vpack.c.b16 %v1632, %v1624
    %v1841 = vpack.c.b16 %v1633, %v1625
    %v1842 = vpack.c.b16 %v1634, %v1626
    %v1843 = vpack.c.b16 %v1635, %v1627
    %v1844 = vpack.c.b16 %v1636, %v1628
    %v1845 = vpack.c.b16 %v1637, %v1629
    %v1846 = vpack.c.b16 %v1638, %v1630
    %v1847 = vpack.c.b16 %v1639, %v1631
    %v1848 = vpack.c.b16 %v1648, %v1640
    %v1849 = vpack.c.b16 %v1649, %v1641
    %v1850 = vpack.c.b16 %v1650, %v1642
    %v1851 = vpack.c.b16 %v1651, %v1643
    %v1852 = vpack.c.b16 %v1652, %v1644
    %v1853 = vpack.c.b16 %v1653, %v1645
    %v1854 = vpack.c.b16 %v1654, %v1646
    %v1855 = vpack.c.b16 %v1655, %v1647
    %v1856 = vpack.c.b16 %v1664, %v1656
    %v1857 = vpack.c.b16 %v1665, %v1657
    %v1858 = vpack.c.b16 %v1666, %v1658
    %v1859 = vpack.c.b16 %v1667, %v1659
    %v1860 = vpack.c.b16 %v1668, %v1660
    %v1861 = vpack.c.b16 %v1669, %v1661
    %v1862 = vpack.c.b16 %v1670, %v1662
    %v1863 = vpack.c.b16 %v1671, %v1663
    %v1864 = vpack.c.b16 %v1680, %v1672
    %v1865 = vpack.c.b16 %v1681, %v1673
    %v1866 = vpack.c.b16 %v1682, %v1674
    %v1867 = vpack.c.b16 %v1683, %v1675
    %v1868 = vpack.c.b16 %v1684, %v1676
    %v1869 = vpack.c.b16 %v1685, %v1677
    %v1870 = vpack.c.b16 %v1686, %v1678
    %v1871 = vpack.c.b16 %v1687, %v1679
    %v1872 = vpack.c.b16 %v1696, %v1688
    %v1873 = vpack.c.b16 %v1697, %v1689
    %v1874 = vpack.c.b16 %v1698, %v1690
    %v1875 = vpack.c.b16 %v1699, %v1691
    %v1876 = vpack.c.b16 %v1700, %v1692
    %v1877 = vpack.c.b16 %v1701, %v1693
    %v1878 = vpack.c.b16 %v1702, %v1694
    %v1879 = vpack.c.b16 %v1703, %v1695
    %v1880 = vpack.c.b16 %v1712, %v1704
    %v1881 = vpack.c.b16 %v1713, %v1705
    %v1882 = vpack.c.b16 %v1714, %v1706
    %v1883 = vpack.c.b16 %v1715, %v1707
    %v1884 = vpack.c.b16 %v1716, %v1708
    %v1885 = vpack.c.b16 %v1717, %v1709
    %v1886 = vpack.c.b16 %v1718, %v1710
    %v1887 = vpack.c.b16 %v1719, %v1711
    %v1888 = vpack.c.b16 %v1728, %v1720
    %v1889 = vpack.c.b16 %v1729, %v1721
    %v1890 = vpack.c.b16 %v1730, %v1722
    %v1891 = vpack.c.b16 %v1731, %v1723
    %v1892 = vpack.c.b16 %v1732, %v1724
    %v1893 = vpack.c.b16 %v1733, %v1725
    %v1894 = vpack.c.b16 %v1734, %v1726
    %v1895 = vpack.c.b16 %v1735, %v1727
    %v1896 = vpack.c.b16 %v1744, %v1736
    %v1897 = vpack.c.b16 %v1745, %v1737
    %v1898 = vpack.c.b16 %v1746, %v1738
    %v1899 = vpack.c.b16 %v1747, %v1739
    %v1900 = vpack.c.b16 %v1748, %v1740
    %v1901 = vpack.c.b16 %v1749, %v1741
    %v1902 = vpack.c.b16 %v1750, %v1742
    %v1903 = vpack.c.b16 %v1751, %v1743
    %v1904 = vpack.c.b16 %v1760, %v1752
    %v1905 = vpack.c.b16 %v1761, %v1753
    %v1906 = vpack.c.b16 %v1762, %v1754
    %v1907 = vpack.c.b16 %v1763, %v1755
    %v1908 = vpack.c.b16 %v1764, %v1756
    %v1909 = vpack.c.b16 %v1765, %v1757
    %v1910 = vpack.c.b16 %v1766, %v1758
    %v1911 = vpack.c.b16 %v1767, %v1759
    %v1912 = vpack.c.b16 %v1776, %v1768
    %v1913 = vpack.c.b16 %v1777, %v1769
    %v1914 = vpack.c.b16 %v1778, %v1770
    %v1915 = vpack.c.b16 %v1779, %v1771
    %v1916 = vpack.c.b16 %v1780, %v1772
    %v1917 = vpack.c.b16 %v1781, %v1773
    %v1918 = vpack.c.b16 %v1782, %v1774
    %v1919 = vpack.c.b16 %v1783, %v1775
    %v1920 = vpack.c.b16 %v1792, %v1784
    %v1921 = vpack.c.b16 %v1793, %v1785
    %v1922 = vpack.c.b16 %v1794, %v1786
    %v1923 = vpack.c.b16 %v1795, %v1787
    %v1924 = vpack.c.b16 %v1796, %v1788
    %v1925 = vpack.c.b16 %v1797, %v1789
    %v1926 = vpack.c.b16 %v1798, %v1790
    %v1927 = vpack.c.b16 %v1799, %v1791
    %2056 = vmatprep.subr.bf16.mxu0 %v1801
    %2057 = vmatpush1.bf16.msra.mxu0 %v1800
    %2058 = vmatprep.subr.bf16.mxu0 %v1809
    %2059 = vmatpush1.bf16.msra.mxu0 %v1808
    %2060 = vmatprep.subr.bf16.mxu0 %v1817
    %2061 = vmatpush1.bf16.msra.mxu0 %v1816
    %2062 = vmatprep.subr.bf16.mxu0 %v1825
    %2063 = vmatpush1.bf16.msra.mxu0 %v1824
    %2064 = vmatprep.subr.bf16.mxu0 %v1833
    %2065 = vmatpush1.bf16.msra.mxu0 %v1832
    %2066 = vmatprep.subr.bf16.mxu0 %v1841
    %2067 = vmatpush1.bf16.msra.mxu0 %v1840
    %2068 = vmatprep.subr.bf16.mxu0 %v1849
    %2069 = vmatpush1.bf16.msra.mxu0 %v1848
    %2070 = vmatprep.subr.bf16.mxu0 %v1857
    %2071 = vmatpush1.bf16.msra.mxu0 %v1856
    %2072 = vmatprep.subr.bf16.mxu0 %v1865
    %2073 = vmatpush1.bf16.msra.mxu0 %v1864
    %2074 = vmatprep.subr.bf16.mxu0 %v1873
    %2075 = vmatpush1.bf16.msra.mxu0 %v1872
    %2076 = vmatprep.subr.bf16.mxu0 %v1881
    %2077 = vmatpush1.bf16.msra.mxu0 %v1880
    %2078 = vmatprep.subr.bf16.mxu0 %v1889
    %2079 = vmatpush1.bf16.msra.mxu0 %v1888
    %2080 = vmatprep.subr.bf16.mxu0 %v1897
    %2081 = vmatpush1.bf16.msra.mxu0 %v1896
    %2082 = vmatprep.subr.bf16.mxu0 %v1905
    %2083 = vmatpush1.bf16.msra.mxu0 %v1904
    %2084 = vmatprep.subr.bf16.mxu0 %v1913
    %2085 = vmatpush1.bf16.msra.mxu0 %v1912
    %2086 = vmatprep.subr.bf16.mxu0 %v1921
    %2087 = vmatpush1.bf16.msra.mxu0 %v1920
    %2088 = vmatprep.mubr.bf16.mxu0 %v1374
    %2089 = vmatmul.mubr.bf16.gmra.mrb[0].mxu0 %v1373
    %v2090 = vpop.f32.mrb[0].mxu0
    %v2091 = vadd.f32 %v1379, %v2090
    %v2092 = vpop.f32.mrb[0].mxu0
    %v2093 = vadd.f32 %v1383, %v2092
    %v2094 = vpop.f32.mrb[0].mxu0
    %v2095 = vadd.f32 %v1379, %v2094
    %v2096 = vpop.f32.mrb[0].mxu0
    %v2097 = vadd.f32 %v1383, %v2096
    %2098 = vdwg.mxu0
    %2099 = vmatprep.subr.bf16.mxu0 %v1803
    %2100 = vmatpush1.bf16.msra.mxu0 %v1802
    %2101 = vmatprep.subr.bf16.mxu0 %v1811
    %2102 = vmatpush1.bf16.msra.mxu0 %v1810
    %2103 = vmatprep.subr.bf16.mxu0 %v1819
    %2104 = vmatpush1.bf16.msra.mxu0 %v1818
    %2105 = vmatprep.subr.bf16.mxu0 %v1827
    %2106 = vmatpush1.bf16.msra.mxu0 %v1826
    %2107 = vmatprep.subr.bf16.mxu0 %v1835
    %2108 = vmatpush1.bf16.msra.mxu0 %v1834
    %2109 = vmatprep.subr.bf16.mxu0 %v1843
    %2110 = vmatpush1.bf16.msra.mxu0 %v1842
    %2111 = vmatprep.subr.bf16.mxu0 %v1851
    %2112 = vmatpush1.bf16.msra.mxu0 %v1850
    %2113 = vmatprep.subr.bf16.mxu0 %v1859
    %2114 = vmatpush1.bf16.msra.mxu0 %v1858
    %2115 = vmatprep.subr.bf16.mxu0 %v1867
    %2116 = vmatpush1.bf16.msra.mxu0 %v1866
    %2117 = vmatprep.subr.bf16.mxu0 %v1875
    %2118 = vmatpush1.bf16.msra.mxu0 %v1874
    %2119 = vmatprep.subr.bf16.mxu0 %v1883
    %2120 = vmatpush1.bf16.msra.mxu0 %v1882
    %2121 = vmatprep.subr.bf16.mxu0 %v1891
    %2122 = vmatpush1.bf16.msra.mxu0 %v1890
    %2123 = vmatprep.subr.bf16.mxu0 %v1899
    %2124 = vmatpush1.bf16.msra.mxu0 %v1898
    %2125 = vmatprep.subr.bf16.mxu0 %v1907
    %2126 = vmatpush1.bf16.msra.mxu0 %v1906
    %2127 = vmatprep.subr.bf16.mxu0 %v1915
    %2128 = vmatpush1.bf16.msra.mxu0 %v1914
    %2129 = vmatprep.subr.bf16.mxu0 %v1923
    %2130 = vmatpush1.bf16.msra.mxu0 %v1922
    %2131 = vmatprep.mubr.bf16.mxu0 %v1374
    %2132 = vmatmul.mubr.bf16.gmra.mrb[0].mxu0 %v1373
    %v2133 = vpop.f32.mrb[0].mxu0
    %v2134 = vadd.f32 %v1387, %v2133
    %v2135 = vpop.f32.mrb[0].mxu0
    %v2136 = vadd.f32 %v1391, %v2135
    %v2137 = vpop.f32.mrb[0].mxu0
    %v2138 = vadd.f32 %v1387, %v2137
    %v2139 = vpop.f32.mrb[0].mxu0
    %v2140 = vadd.f32 %v1391, %v2139
    %2141 = vdwg.mxu0
    %2142 = vmatprep.subr.bf16.mxu0 %v1805
    %2143 = vmatpush1.bf16.msra.mxu0 %v1804
    %2144 = vmatprep.subr.bf16.mxu0 %v1813
    %2145 = vmatpush1.bf16.msra.mxu0 %v1812
    %2146 = vmatprep.subr.bf16.mxu0 %v1821
    %2147 = vmatpush1.bf16.msra.mxu0 %v1820
    %2148 = vmatprep.subr.bf16.mxu0 %v1829
    %2149 = vmatpush1.bf16.msra.mxu0 %v1828
    %2150 = vmatprep.subr.bf16.mxu0 %v1837
    %2151 = vmatpush1.bf16.msra.mxu0 %v1836
    %2152 = vmatprep.subr.bf16.mxu0 %v1845
    %2153 = vmatpush1.bf16.msra.mxu0 %v1844
    %2154 = vmatprep.subr.bf16.mxu0 %v1853
    %2155 = vmatpush1.bf16.msra.mxu0 %v1852
    %2156 = vmatprep.subr.bf16.mxu0 %v1861
    %2157 = vmatpush1.bf16.msra.mxu0 %v1860
    %2158 = vmatprep.subr.bf16.mxu0 %v1869
    %2159 = vmatpush1.bf16.msra.mxu0 %v1868
    %2160 = vmatprep.subr.bf16.mxu0 %v1877
    %2161 = vmatpush1.bf16.msra.mxu0 %v1876
    %2162 = vmatprep.subr.bf16.mxu0 %v1885
    %2163 = vmatpush1.bf16.msra.mxu0 %v1884
    %2164 = vmatprep.subr.bf16.mxu0 %v1893
    %2165 = vmatpush1.bf16.msra.mxu0 %v1892
    %2166 = vmatprep.subr.bf16.mxu0 %v1901
    %2167 = vmatpush1.bf16.msra.mxu0 %v1900
    %2168 = vmatprep.subr.bf16.mxu0 %v1909
    %2169 = vmatpush1.bf16.msra.mxu0 %v1908
    %2170 = vmatprep.subr.bf16.mxu0 %v1917
    %2171 = vmatpush1.bf16.msra.mxu0 %v1916
    %2172 = vmatprep.subr.bf16.mxu0 %v1925
    %2173 = vmatpush1.bf16.msra.mxu0 %v1924
    %2174 = vmatprep.mubr.bf16.mxu0 %v1374
    %2175 = vmatmul.mubr.bf16.gmra.mrb[0].mxu0 %v1373
    %v2176 = vpop.f32.mrb[0].mxu0
    %v2177 = vadd.f32 %v1395, %v2176
    %v2178 = vpop.f32.mrb[0].mxu0
    %v2179 = vadd.f32 %v1399, %v2178
    %v2180 = vpop.f32.mrb[0].mxu0
    %v2181 = vadd.f32 %v1395, %v2180
    %v2182 = vpop.f32.mrb[0].mxu0
    %v2183 = vadd.f32 %v1399, %v2182
    %2184 = vdwg.mxu0
    %2185 = vmatprep.subr.bf16.mxu0 %v1807
    %2186 = vmatpush1.bf16.msra.mxu0 %v1806
    %2187 = vmatprep.subr.bf16.mxu0 %v1815
    %2188 = vmatpush1.bf16.msra.mxu0 %v1814
    %2189 = vmatprep.subr.bf16.mxu0 %v1823
    %2190 = vmatpush1.bf16.msra.mxu0 %v1822
    %2191 = vmatprep.subr.bf16.mxu0 %v1831
    %2192 = vmatpush1.bf16.msra.mxu0 %v1830
    %2193 = vmatprep.subr.bf16.mxu0 %v1839
    %2194 = vmatpush1.bf16.msra.mxu0 %v1838
    %2195 = vmatprep.subr.bf16.mxu0 %v1847
    %2196 = vmatpush1.bf16.msra.mxu0 %v1846
    %2197 = vmatprep.subr.bf16.mxu0 %v1855
    %2198 = vmatpush1.bf16.msra.mxu0 %v1854
    %2199 = vmatprep.subr.bf16.mxu0 %v1863
    %2200 = vmatpush1.bf16.msra.mxu0 %v1862
    %2201 = vmatprep.subr.bf16.mxu0 %v1871
    %2202 = vmatpush1.bf16.msra.mxu0 %v1870
    %2203 = vmatprep.subr.bf16.mxu0 %v1879
    %2204 = vmatpush1.bf16.msra.mxu0 %v1878
    %2205 = vmatprep.subr.bf16.mxu0 %v1887
    %2206 = vmatpush1.bf16.msra.mxu0 %v1886
    %2207 = vmatprep.subr.bf16.mxu0 %v1895
    %2208 = vmatpush1.bf16.msra.mxu0 %v1894
    %2209 = vmatprep.subr.bf16.mxu0 %v1903
    %2210 = vmatpush1.bf16.msra.mxu0 %v1902
    %2211 = vmatprep.subr.bf16.mxu0 %v1911
    %2212 = vmatpush1.bf16.msra.mxu0 %v1910
    %2213 = vmatprep.subr.bf16.mxu0 %v1919
    %2214 = vmatpush1.bf16.msra.mxu0 %v1918
    %2215 = vmatprep.subr.bf16.mxu0 %v1927
    %2216 = vmatpush1.bf16.msra.mxu0 %v1926
    %2217 = vmatprep.mubr.bf16.mxu0 %v1374
    %2218 = vmatmul.mubr.bf16.gmra.mrb[0].mxu0 %v1373
    %v2219 = vpop.f32.mrb[0].mxu0
    %v2220 = vadd.f32 %v1403, %v2219
    %v2221 = vpop.f32.mrb[0].mxu0
    %v2222 = vadd.f32 %v1407, %v2221
    %v2223 = vpop.f32.mrb[0].mxu0
    %v2224 = vadd.f32 %v1403, %v2223
    %v2225 = vpop.f32.mrb[0].mxu0
    %v2226 = vadd.f32 %v1407, %v2225
    %2227 = vdwg.mxu0
    %v2236 = vunpack.c.l.b16 %v331
    %v2237 = vunpack.c.h.b16 %v331
    %v2238 = vunpack.c.l.b16 %v332
    %v2239 = vunpack.c.h.b16 %v332
    %v2240 = vunpack.c.l.b16 %v333
    %v2241 = vunpack.c.h.b16 %v333
    %v2242 = vunpack.c.l.b16 %v334
    %v2243 = vunpack.c.h.b16 %v334
    %v2244 = vunpack.c.l.b16 %v335
    %v2245 = vunpack.c.h.b16 %v335
    %v2246 = vunpack.c.l.b16 %v336
    %v2247 = vunpack.c.h.b16 %v336
    %v2248 = vunpack.c.l.b16 %v337
    %v2249 = vunpack.c.h.b16 %v337
    %v2250 = vunpack.c.l.b16 %v338
    %v2251 = vunpack.c.h.b16 %v338
    %v2252 = vpack.c.b16 %v2238, %v2236
    %v2253 = vpack.c.b16 %v2239, %v2237
    %v2254 = vpack.c.b16 %v2242, %v2240
    %v2255 = vpack.c.b16 %v2243, %v2241
    %v2256 = vpack.c.b16 %v2246, %v2244
    %v2257 = vpack.c.b16 %v2247, %v2245
    %v2258 = vpack.c.b16 %v2250, %v2248
    %v2259 = vpack.c.b16 %v2251, %v2249
    %2268 = vmatprep.subr.bf16.mxu0 %v2253
    %2269 = vmatpush1.bf16.msra.mxu0 %v2252
    %2270 = vmatprep.subr.bf16.mxu0 %v2255
    %2271 = vmatpush1.bf16.msra.mxu0 %v2254
    %2272 = vmatprep.subr.bf16.mxu0 %v2257
    %2273 = vmatpush1.bf16.msra.mxu0 %v2256
    %2274 = vmatprep.subr.bf16.mxu0 %v2259
    %2275 = vmatpush1.bf16.msra.mxu0 %v2258
    %2276 = vmatprep.subr.bf16.mxu0 0
    %2277 = vmatpush1.bf16.msra.mxu0 0
    %2278 = vmatprep.subr.bf16.mxu0 0
    %2279 = vmatpush1.bf16.msra.mxu0 0
    %2280 = vmatprep.subr.bf16.mxu0 0
    %2281 = vmatpush1.bf16.msra.mxu0 0
    %2282 = vmatprep.subr.bf16.mxu0 0
    %2283 = vmatpush1.bf16.msra.mxu0 0
    %2284 = vmatprep.subr.bf16.mxu0 0
    %2285 = vmatpush1.bf16.msra.mxu0 0
    %2286 = vmatprep.subr.bf16.mxu0 0
    %2287 = vmatpush1.bf16.msra.mxu0 0
    %2288 = vmatprep.subr.bf16.mxu0 0
    %2289 = vmatpush1.bf16.msra.mxu0 0
    %2290 = vmatprep.subr.bf16.mxu0 0
    %2291 = vmatpush1.bf16.msra.mxu0 0
    %2292 = vmatprep.subr.bf16.mxu0 0
    %2293 = vmatpush1.bf16.msra.mxu0 0
    %2294 = vmatprep.subr.bf16.mxu0 0
    %2295 = vmatpush1.bf16.msra.mxu0 0
    %2296 = vmatprep.subr.bf16.mxu0 0
    %2297 = vmatpush1.bf16.msra.mxu0 0
    %2298 = vmatprep.subr.bf16.mxu0 0
    %2299 = vmatpush1.bf16.msra.mxu0 0
    %2300 = vmatprep.mubr.bf16.mxu0 0
    %2301 = vmatmul.mubr.bf16.gmra.mrb[0].mxu0 %v942
    %v2302 = vpop.f32.mrb[0].mxu0
    %v2303 = vadd.f32 0.0, %v2302
    %v2304 = vpop.f32.mrb[0].mxu0
    %v2305 = vadd.f32 0.0, %v2304
    %v2306 = vpop.f32.mrb[0].mxu0
    %v2307 = vadd.f32 0.0, %v2306
    %v2308 = vpop.f32.mrb[0].mxu0
    %v2309 = vadd.f32 0.0, %v2308
    %2310 = vdwg.mxu0
    %v2311 = vadd.f32 %v2091, %v2303
    %v2312 = vadd.f32 %v2093, %v2305
    %v2313 = vadd.f32 %v2095, %v2307
    %v2314 = vadd.f32 %v2097, %v2309
    %v2315 = vxor.u32 %v2311, 2147483648
    %v2316 = vxor.u32 %v2312, 2147483648
    %v2317 = vxor.u32 %v2313, 2147483648
    %v2318 = vxor.u32 %v2314, 2147483648
    %v2319 = vmul.f32 %v2315, 1.442695
    %v2320 = vpow.pop %v2319
    %v2321 = vmul.f32 %v2316, 1.442695
    %v2322 = vpow.pop %v2321
    %v2323 = vmul.f32 %v2317, 1.442695
    %v2324 = vpow.pop %v2323
    %v2325 = vmul.f32 %v2318, 1.442695
    %v2326 = vpow.pop %v2325
    %v2327 = vadd.f32 %v2320, 1.0
    %v2328 = vadd.f32 %v2322, 1.0
    %v2329 = vadd.f32 %v2324, 1.0
    %v2330 = vadd.f32 %v2326, 1.0
    %v2331 = vrcp.pop %v2327
    %v2332 = vmul.f32 1.0, %v2331
    %v2333 = vrcp.pop %v2328
    %v2334 = vmul.f32 1.0, %v2333
    %v2335 = vrcp.pop %v2329
    %v2336 = vmul.f32 1.0, %v2335
    %v2337 = vrcp.pop %v2330
    %v2338 = vmul.f32 1.0, %v2337
    %v2339 = vmul.f32 %v2332, %v357
    %v2340 = vmul.f32 %v2334, %v358
    %v2341 = vmul.f32 %v2336, %v357
    %v2342 = vmul.f32 %v2338, %v358
    %v2343 = vadd.f32 %v2339, %v359
    %v2344 = vadd.f32 %v2340, %v360
    %v2345 = vadd.f32 %v2341, %v359
    %v2346 = vadd.f32 %v2342, %v360
    %v2347 = vmul.f32 %v2343, 0.0
    %v2348 = vmul.f32 %v2345, 0.0
    %v2349 = vmul.f32 %v2343, %v2344
    %v2350 = vmul.f32 %v2345, %v2346
    %2353 = vrot.lane.b32.xlu0 %v2349, 64
    %v2354 = vpop.permute.xlu0 %2353
    %2355 = vrot.lane.b32.xlu0 %v2350, 64
    %v2356 = vpop.permute.xlu0 %2355
    %v2359 = vadd.f32 %v2347, %v2354
    %v2360 = vadd.f32 %v2348, %v2356
    %v2361 = vtanh.pop %v2359
    %v2362 = vtanh.pop %v2360
    %v2363 = vmul.f32 %v2344, %v2361
    %v2364 = vmul.f32 %v2346, %v2362
    %v2365 = vpack.c.bf16 %v2364, %v2363
    %2367 = vrot.lane.b32.xlu0 %v2365, 64
    %v2368 = vpop.permute.xlu0 %2367
    %v2370 = vsel %vm940, %v2368, 0
    %2372 = vmatprep.subr.bf16.mxu0 %v2253
    %2373 = vmatpush1.bf16.msra.mxu0 %v2252
    %2374 = vmatprep.subr.bf16.mxu0 %v2255
    %2375 = vmatpush1.bf16.msra.mxu0 %v2254
    %2376 = vmatprep.subr.bf16.mxu0 %v2257
    %2377 = vmatpush1.bf16.msra.mxu0 %v2256
    %2378 = vmatprep.subr.bf16.mxu0 %v2259
    %2379 = vmatpush1.bf16.msra.mxu0 %v2258
    %2380 = vmatprep.subr.bf16.mxu0 0
    %2381 = vmatpush1.bf16.msra.mxu0 0
    %2382 = vmatprep.subr.bf16.mxu0 0
    %2383 = vmatpush1.bf16.msra.mxu0 0
    %2384 = vmatprep.subr.bf16.mxu0 0
    %2385 = vmatpush1.bf16.msra.mxu0 0
    %2386 = vmatprep.subr.bf16.mxu0 0
    %2387 = vmatpush1.bf16.msra.mxu0 0
    %2388 = vmatprep.subr.bf16.mxu0 0
    %2389 = vmatpush1.bf16.msra.mxu0 0
    %2390 = vmatprep.subr.bf16.mxu0 0
    %2391 = vmatpush1.bf16.msra.mxu0 0
    %2392 = vmatprep.subr.bf16.mxu0 0
    %2393 = vmatpush1.bf16.msra.mxu0 0
    %2394 = vmatprep.subr.bf16.mxu0 0
    %2395 = vmatpush1.bf16.msra.mxu0 0
    %2396 = vmatprep.subr.bf16.mxu0 0
    %2397 = vmatpush1.bf16.msra.mxu0 0
    %2398 = vmatprep.subr.bf16.mxu0 0
    %2399 = vmatpush1.bf16.msra.mxu0 0
    %2400 = vmatprep.subr.bf16.mxu0 0
    %2401 = vmatpush1.bf16.msra.mxu0 0
    %2402 = vmatprep.subr.bf16.mxu0 0
    %2403 = vmatpush1.bf16.msra.mxu0 0
    %2404 = vmatprep.mubr.bf16.mxu0 0
    %2405 = vmatmul.mubr.bf16.gmra.mrb[0].mxu0 %v2370
    %v2406 = vpop.f32.mrb[0].mxu0
    %v2407 = vadd.f32 0.0, %v2406
    %v2408 = vpop.f32.mrb[0].mxu0
    %v2409 = vadd.f32 0.0, %v2408
    %v2410 = vpop.f32.mrb[0].mxu0
    %v2411 = vadd.f32 0.0, %v2410
    %v2412 = vpop.f32.mrb[0].mxu0
    %v2413 = vadd.f32 0.0, %v2412
    %2414 = vdwg.mxu0
    %v2415 = vadd.f32 %v2134, %v2407
    %v2416 = vadd.f32 %v2136, %v2409
    %v2417 = vadd.f32 %v2138, %v2411
    %v2418 = vadd.f32 %v2140, %v2413
    %v2419 = vxor.u32 %v2415, 2147483648
    %v2420 = vxor.u32 %v2416, 2147483648
    %v2421 = vxor.u32 %v2417, 2147483648
    %v2422 = vxor.u32 %v2418, 2147483648
    %v2423 = vmul.f32 %v2419, 1.442695
    %v2424 = vpow.pop %v2423
    %v2425 = vmul.f32 %v2420, 1.442695
    %v2426 = vpow.pop %v2425
    %v2427 = vmul.f32 %v2421, 1.442695
    %v2428 = vpow.pop %v2427
    %v2429 = vmul.f32 %v2422, 1.442695
    %v2430 = vpow.pop %v2429
    %v2431 = vadd.f32 %v2424, 1.0
    %v2432 = vadd.f32 %v2426, 1.0
    %v2433 = vadd.f32 %v2428, 1.0
    %v2434 = vadd.f32 %v2430, 1.0
    %v2435 = vrcp.pop %v2431
    %v2436 = vmul.f32 1.0, %v2435
    %v2437 = vrcp.pop %v2432
    %v2438 = vmul.f32 1.0, %v2437
    %v2439 = vrcp.pop %v2433
    %v2440 = vmul.f32 1.0, %v2439
    %v2441 = vrcp.pop %v2434
    %v2442 = vmul.f32 1.0, %v2441
    %v2443 = vmul.f32 %v2436, %v357
    %v2444 = vmul.f32 %v2438, %v358
    %v2445 = vmul.f32 %v2440, %v357
    %v2446 = vmul.f32 %v2442, %v358
    %v2447 = vadd.f32 %v2443, %v359
    %v2448 = vadd.f32 %v2444, %v360
    %v2449 = vadd.f32 %v2445, %v359
    %v2450 = vadd.f32 %v2446, %v360
    %v2451 = vmul.f32 %v2447, %v2359
    %v2452 = vmul.f32 %v2449, %v2360
    %v2453 = vmul.f32 %v2447, %v2448
    %v2454 = vmul.f32 %v2449, %v2450
    %2457 = vrot.lane.b32.xlu0 %v2453, 64
    %v2458 = vpop.permute.xlu0 %2457
    %2459 = vrot.lane.b32.xlu0 %v2454, 64
    %v2460 = vpop.permute.xlu0 %2459
    %v2463 = vadd.f32 %v2451, %v2458
    %v2464 = vadd.f32 %v2452, %v2460
    %v2465 = vtanh.pop %v2463
    %v2466 = vtanh.pop %v2464
    %v2467 = vmul.f32 %v2448, %v2465
    %v2468 = vmul.f32 %v2450, %v2466
    %v2469 = vpack.c.bf16 %v2468, %v2467
    %2471 = vrot.lane.b32.xlu0 %v2469, 64
    %v2472 = vpop.permute.xlu0 %2471
    %v2474 = vsel %vm940, %v2472, 0
    %2476 = vmatprep.subr.bf16.mxu0 %v2253
    %2477 = vmatpush1.bf16.msra.mxu0 %v2252
    %2478 = vmatprep.subr.bf16.mxu0 %v2255
    %2479 = vmatpush1.bf16.msra.mxu0 %v2254
    %2480 = vmatprep.subr.bf16.mxu0 %v2257
    %2481 = vmatpush1.bf16.msra.mxu0 %v2256
    %2482 = vmatprep.subr.bf16.mxu0 %v2259
    %2483 = vmatpush1.bf16.msra.mxu0 %v2258
    %2484 = vmatprep.subr.bf16.mxu0 0
    %2485 = vmatpush1.bf16.msra.mxu0 0
    %2486 = vmatprep.subr.bf16.mxu0 0
    %2487 = vmatpush1.bf16.msra.mxu0 0
    %2488 = vmatprep.subr.bf16.mxu0 0
    %2489 = vmatpush1.bf16.msra.mxu0 0
    %2490 = vmatprep.subr.bf16.mxu0 0
    %2491 = vmatpush1.bf16.msra.mxu0 0
    %2492 = vmatprep.subr.bf16.mxu0 0
    %2493 = vmatpush1.bf16.msra.mxu0 0
    %2494 = vmatprep.subr.bf16.mxu0 0
    %2495 = vmatpush1.bf16.msra.mxu0 0
    %2496 = vmatprep.subr.bf16.mxu0 0
    %2497 = vmatpush1.bf16.msra.mxu0 0
    %2498 = vmatprep.subr.bf16.mxu0 0
    %2499 = vmatpush1.bf16.msra.mxu0 0
    %2500 = vmatprep.subr.bf16.mxu0 0
    %2501 = vmatpush1.bf16.msra.mxu0 0
    %2502 = vmatprep.subr.bf16.mxu0 0
    %2503 = vmatpush1.bf16.msra.mxu0 0
    %2504 = vmatprep.subr.bf16.mxu0 0
    %2505 = vmatpush1.bf16.msra.mxu0 0
    %2506 = vmatprep.subr.bf16.mxu0 0
    %2507 = vmatpush1.bf16.msra.mxu0 0
    %2508 = vmatprep.mubr.bf16.mxu0 0
    %2509 = vmatmul.mubr.bf16.gmra.mrb[0].mxu0 %v2474
    %v2510 = vpop.f32.mrb[0].mxu0
    %v2511 = vadd.f32 0.0, %v2510
    %v2512 = vpop.f32.mrb[0].mxu0
    %v2513 = vadd.f32 0.0, %v2512
    %v2514 = vpop.f32.mrb[0].mxu0
    %v2515 = vadd.f32 0.0, %v2514
    %v2516 = vpop.f32.mrb[0].mxu0
    %v2517 = vadd.f32 0.0, %v2516
    %2518 = vdwg.mxu0
    %v2519 = vadd.f32 %v2177, %v2511
    %v2520 = vadd.f32 %v2179, %v2513
    %v2521 = vadd.f32 %v2181, %v2515
    %v2522 = vadd.f32 %v2183, %v2517
    %v2523 = vxor.u32 %v2519, 2147483648
    %v2524 = vxor.u32 %v2520, 2147483648
    %v2525 = vxor.u32 %v2521, 2147483648
    %v2526 = vxor.u32 %v2522, 2147483648
    %v2527 = vmul.f32 %v2523, 1.442695
    %v2528 = vpow.pop %v2527
    %v2529 = vmul.f32 %v2524, 1.442695
    %v2530 = vpow.pop %v2529
    %v2531 = vmul.f32 %v2525, 1.442695
    %v2532 = vpow.pop %v2531
    %v2533 = vmul.f32 %v2526, 1.442695
    %v2534 = vpow.pop %v2533
    %v2535 = vadd.f32 %v2528, 1.0
    %v2536 = vadd.f32 %v2530, 1.0
    %v2537 = vadd.f32 %v2532, 1.0
    %v2538 = vadd.f32 %v2534, 1.0
    %v2539 = vrcp.pop %v2535
    %v2540 = vmul.f32 1.0, %v2539
    %v2541 = vrcp.pop %v2536
    %v2542 = vmul.f32 1.0, %v2541
    %v2543 = vrcp.pop %v2537
    %v2544 = vmul.f32 1.0, %v2543
    %v2545 = vrcp.pop %v2538
    %v2546 = vmul.f32 1.0, %v2545
    %v2547 = vmul.f32 %v2540, %v357
    %v2548 = vmul.f32 %v2542, %v358
    %v2549 = vmul.f32 %v2544, %v357
    %v2550 = vmul.f32 %v2546, %v358
    %v2551 = vadd.f32 %v2547, %v359
    %v2552 = vadd.f32 %v2548, %v360
    %v2553 = vadd.f32 %v2549, %v359
    %v2554 = vadd.f32 %v2550, %v360
    %v2555 = vmul.f32 %v2551, %v2463
    %v2556 = vmul.f32 %v2553, %v2464
    %v2557 = vmul.f32 %v2551, %v2552
    %v2558 = vmul.f32 %v2553, %v2554
    %2561 = vrot.lane.b32.xlu0 %v2557, 64
    %v2562 = vpop.permute.xlu0 %2561
    %2563 = vrot.lane.b32.xlu0 %v2558, 64
    %v2564 = vpop.permute.xlu0 %2563
    %v2567 = vadd.f32 %v2555, %v2562
    %v2568 = vadd.f32 %v2556, %v2564
    %v2569 = vtanh.pop %v2567
    %v2570 = vtanh.pop %v2568
    %v2571 = vmul.f32 %v2552, %v2569
    %v2572 = vmul.f32 %v2554, %v2570
    %v2573 = vpack.c.bf16 %v2572, %v2571
    %2575 = vrot.lane.b32.xlu0 %v2573, 64
    %v2576 = vpop.permute.xlu0 %2575
    %v2578 = vsel %vm940, %v2576, 0
    %2580 = vmatprep.subr.bf16.mxu0 %v2253
    %2581 = vmatpush1.bf16.msra.mxu0 %v2252
    %2582 = vmatprep.subr.bf16.mxu0 %v2255
    %2583 = vmatpush1.bf16.msra.mxu0 %v2254
    %2584 = vmatprep.subr.bf16.mxu0 %v2257
    %2585 = vmatpush1.bf16.msra.mxu0 %v2256
    %2586 = vmatprep.subr.bf16.mxu0 %v2259
    %2587 = vmatpush1.bf16.msra.mxu0 %v2258
    %2588 = vmatprep.subr.bf16.mxu0 0
    %2589 = vmatpush1.bf16.msra.mxu0 0
    %2590 = vmatprep.subr.bf16.mxu0 0
    %2591 = vmatpush1.bf16.msra.mxu0 0
    %2592 = vmatprep.subr.bf16.mxu0 0
    %2593 = vmatpush1.bf16.msra.mxu0 0
    %2594 = vmatprep.subr.bf16.mxu0 0
    %2595 = vmatpush1.bf16.msra.mxu0 0
    %2596 = vmatprep.subr.bf16.mxu0 0
    %2597 = vmatpush1.bf16.msra.mxu0 0
    %2598 = vmatprep.subr.bf16.mxu0 0
    %2599 = vmatpush1.bf16.msra.mxu0 0
    %2600 = vmatprep.subr.bf16.mxu0 0
    %2601 = vmatpush1.bf16.msra.mxu0 0
    %2602 = vmatprep.subr.bf16.mxu0 0
    %2603 = vmatpush1.bf16.msra.mxu0 0
    %2604 = vmatprep.subr.bf16.mxu0 0
    %2605 = vmatpush1.bf16.msra.mxu0 0
    %2606 = vmatprep.subr.bf16.mxu0 0
    %2607 = vmatpush1.bf16.msra.mxu0 0
    %2608 = vmatprep.subr.bf16.mxu0 0
    %2609 = vmatpush1.bf16.msra.mxu0 0
    %2610 = vmatprep.subr.bf16.mxu0 0
    %2611 = vmatpush1.bf16.msra.mxu0 0
    %2612 = vmatprep.mubr.bf16.mxu0 0
    %2613 = vmatmul.mubr.bf16.gmra.mrb[0].mxu0 %v2578
    %v2614 = vpop.f32.mrb[0].mxu0
    %v2615 = vadd.f32 0.0, %v2614
    %v2616 = vpop.f32.mrb[0].mxu0
    %v2617 = vadd.f32 0.0, %v2616
    %v2618 = vpop.f32.mrb[0].mxu0
    %v2619 = vadd.f32 0.0, %v2618
    %v2620 = vpop.f32.mrb[0].mxu0
    %v2621 = vadd.f32 0.0, %v2620
    %2622 = vdwg.mxu0
    %v2623 = vadd.f32 %v2220, %v2615
    %v2624 = vadd.f32 %v2222, %v2617
    %v2625 = vadd.f32 %v2224, %v2619
    %v2626 = vadd.f32 %v2226, %v2621
    %v2627 = vxor.u32 %v2623, 2147483648
    %v2628 = vxor.u32 %v2624, 2147483648
    %v2629 = vxor.u32 %v2625, 2147483648
    %v2630 = vxor.u32 %v2626, 2147483648
    %v2631 = vmul.f32 %v2627, 1.442695
    %v2632 = vpow.pop %v2631
    %v2633 = vmul.f32 %v2628, 1.442695
    %v2634 = vpow.pop %v2633
    %v2635 = vmul.f32 %v2629, 1.442695
    %v2636 = vpow.pop %v2635
    %v2637 = vmul.f32 %v2630, 1.442695
    %v2638 = vpow.pop %v2637
    %v2639 = vadd.f32 %v2632, 1.0
    %v2640 = vadd.f32 %v2634, 1.0
    %v2641 = vadd.f32 %v2636, 1.0
    %v2642 = vadd.f32 %v2638, 1.0
    %v2643 = vrcp.pop %v2639
    %v2644 = vmul.f32 1.0, %v2643
    %v2645 = vrcp.pop %v2640
    %v2646 = vmul.f32 1.0, %v2645
    %v2647 = vrcp.pop %v2641
    %v2648 = vmul.f32 1.0, %v2647
    %v2649 = vrcp.pop %v2642
    %v2650 = vmul.f32 1.0, %v2649
    %v2651 = vmul.f32 %v2644, %v357
    %v2652 = vmul.f32 %v2646, %v358
    %v2653 = vmul.f32 %v2648, %v357
    %v2654 = vmul.f32 %v2650, %v358
    %v2655 = vadd.f32 %v2651, %v359
    %v2656 = vadd.f32 %v2652, %v360
    %v2657 = vadd.f32 %v2653, %v359
    %v2658 = vadd.f32 %v2654, %v360
    %v2659 = vmul.f32 %v2655, %v2567
    %v2660 = vmul.f32 %v2657, %v2568
    %v2661 = vmul.f32 %v2655, %v2656
    %v2662 = vmul.f32 %v2657, %v2658
    %2665 = vrot.lane.b32.xlu0 %v2661, 64
    %v2666 = vpop.permute.xlu0 %2665
    %2667 = vrot.lane.b32.xlu0 %v2662, 64
    %v2668 = vpop.permute.xlu0 %2667
    %v2671 = vadd.f32 %v2659, %v2666
    %v2672 = vadd.f32 %v2660, %v2668
    %v2673 = vtanh.pop %v2671
    %v2674 = vtanh.pop %v2672
    %v2675 = vmul.f32 %v2656, %v2673
    %v2676 = vmul.f32 %v2658, %v2674
    %v2677 = vpack.c.bf16 %v2676, %v2675
    %v2679 = vlaneseq
    %v2680 = vshrl.u32 %v2679, 7
    %v2681 = vsub.s32 0, %v2680
    %v2682 = vrot.slane %v347, %v2681
    %2685 = vrot.lane.b32.xlu0 %v2677, 64
    %v2686 = vpop.permute.xlu0 %2685
    %v2695 = vunpack.c.l.b16 %v339
    %v2696 = vunpack.c.l.b16 %v340
    %v2697 = vunpack.c.l.b16 %v341
    %v2698 = vunpack.c.l.b16 %v342
    %v2699 = vunpack.c.l.b16 %v343
    %v2700 = vunpack.c.l.b16 %v344
    %v2701 = vunpack.c.l.b16 %v345
    %v2702 = vunpack.c.l.b16 %v346
    %v2703 = vpack.c.b16 %v2696, %v2695
    %v2704 = vpack.c.b16 %v2698, %v2697
    %v2705 = vpack.c.b16 %v2700, %v2699
    %v2706 = vpack.c.b16 %v2702, %v2701
    %v2712 = vsel %vm940, %v2686, 0
    %2714 = vmatprep.subr.bf16.mxu0 0
    %2715 = vmatpush1.bf16.msra.mxu0 %v2703
    %2716 = vmatprep.subr.bf16.mxu0 0
    %2717 = vmatpush1.bf16.msra.mxu0 %v2704
    %2718 = vmatprep.subr.bf16.mxu0 0
    %2719 = vmatpush1.bf16.msra.mxu0 %v2705
    %2720 = vmatprep.subr.bf16.mxu0 0
    %2721 = vmatpush1.bf16.msra.mxu0 %v2706
    %2722 = vmatprep.subr.bf16.mxu0 0
    %2723 = vmatpush1.bf16.msra.mxu0 0
    %2724 = vmatprep.subr.bf16.mxu0 0
    %2725 = vmatpush1.bf16.msra.mxu0 0
    %2726 = vmatprep.subr.bf16.mxu0 0
    %2727 = vmatpush1.bf16.msra.mxu0 0
    %2728 = vmatprep.subr.bf16.mxu0 0
    %2729 = vmatpush1.bf16.msra.mxu0 0
    %2730 = vmatprep.subr.bf16.mxu0 0
    %2731 = vmatpush1.bf16.msra.mxu0 0
    %2732 = vmatprep.subr.bf16.mxu0 0
    %2733 = vmatpush1.bf16.msra.mxu0 0
    %2734 = vmatprep.subr.bf16.mxu0 0
    %2735 = vmatpush1.bf16.msra.mxu0 0
    %2736 = vmatprep.subr.bf16.mxu0 0
    %2737 = vmatpush1.bf16.msra.mxu0 0
    %2738 = vmatprep.subr.bf16.mxu0 0
    %2739 = vmatpush1.bf16.msra.mxu0 0
    %2740 = vmatprep.subr.bf16.mxu0 0
    %2741 = vmatpush1.bf16.msra.mxu0 0
    %2742 = vmatprep.subr.bf16.mxu0 0
    %2743 = vmatpush1.bf16.msra.mxu0 0
    %2744 = vmatprep.subr.bf16.mxu0 0
    %2745 = vmatpush1.bf16.msra.mxu0 0
    %2746 = vmatprep.mubr.bf16.mxu0 0
    %2747 = vmatmul.mubr.bf16.gmra.mrb[0].mxu0 %v2712
    %v2748 = vpop.f32.mrb[0].mxu0
    %v2749 = vadd.f32 %v2682, %v2748
    %v2750 = vpop.f32.mrb[0].mxu0
    %v2751 = vpop.f32.mrb[0].mxu0
    %v2752 = vadd.f32 %v2682, %v2751
    %v2753 = vpop.f32.mrb[0].mxu0
    %2754 = vdwg.mxu0
    %v2755 = vxor.u32 %v2749, 2147483648
    %v2756 = vxor.u32 %v2752, 2147483648
    %v2757 = vmul.f32 %v2755, 1.442695
    %v2758 = vpow.pop %v2757
    %v2759 = vmul.f32 %v2756, 1.442695
    %v2760 = vpow.pop %v2759
    %v2761 = vadd.f32 %v2758, 1.0
    %v2762 = vadd.f32 %v2760, 1.0
    %v2763 = vrcp.pop %v2761
    %v2764 = vmul.f32 1.0, %v2763
    %v2765 = vrcp.pop %v2762
    %v2766 = vmul.f32 1.0, %v2765
    %v2767 = vpack.c.bf16 %v2766, %v2764
    %v2769 = vunpack.c.l.b16 %v2767
    %v2770 = vunpack.c.h.b16 %v2767
    %v2771 = vpack.c.b16 %v2769, %v2769
    %v2772 = vpack.c.b16 %v2770, %v2770
    %2775 = vst [vmem:[#allocation14] sm:$0xf] %v2771
    %2776 = vst [vmem:[#allocation14 + $0x4] sm:$0xf] %v2772
    // Predicated region
    $region66: #{tpu_custom_call.1} parent=1 // pred_check
      _
    $region67: #{tpu_custom_call.1} parent=1 // pred_check_branch
      %2778 = sbr.rel (0) target = $region69
    $region68: #{tpu_custom_call.1} parent=1 // pred_region
      %s2780 = ssub.s32 128, 128
      %2781 = vsyncadd [#allocation4], %s2780
      %s2782 = sshll.u32 [#allocation14], 4
      %s2783 = int_to_ptr.vmem [resolvable:$true] %s2782
      %2788 = dma.vmem_to_hbm [thread:$0]  %s2783, 128, %s9, [#allocation4], 64, 64, 4
    $region69: #{tpu_custom_call.1} parent=1 // pred_fallthru
      _
    // Predicated region
    $region70: #{tpu_custom_call.1} parent=1 // pred_check
      _
    $region71: #{tpu_custom_call.1} parent=1 // pred_check_branch
      %2790 = sbr.rel (0) target = $region73
    $region72: #{tpu_custom_call.1} parent=1 // pred_region
      %2791 = dma.done [#allocation4], 128
    $region73: #{tpu_custom_call.1} parent=1 // pred_fallthru
      _
    %2792 = vsyncpa [#allocation3], 1
    %2793 = vsyncpa [#allocation6], 1
    %2794 = vsyncpa [#allocation9], 1
    %2795 = vsyncpa [#allocation12], 1
    %2796 = vsyncpa [#allocation4], 1

</llo_original>
